<compile_context>
chip_gen: v7x
topology: tpu7x:2x2x1
jax: 0.10.0
libtpu: 0.0.40
codegen_flags: <defaults>
</compile_context>

<pallas_src>
import math

import jax
import jax.numpy as jnp
from jax import lax
from jax.experimental import pallas as pl
from jax.experimental.pallas import tpu as pltpu

SELU_ALPHA = 1.6732632423543772
SELU_SCALE = 1.0507009873554805
BN_EPS = 1e-5


def _replicated_spec(shape):
    """Whole-array block, identical for every grid step (weights / biases)."""
    zeros = (0,) * len(shape)
    return pl.BlockSpec(shape, lambda n: zeros)


def _pick_block(n, target):
    """Largest divisor of n that is <= target, keeping >=2 grid steps if possible."""
    cap = max(1, min(target, n))
    if n >= 2:
        cap = max(1, min(cap, n // 2))      # keep >=2 grid steps (v7x: 2 TCs)
    for b in range(cap, 0, -1):
        if n % b == 0:
            return b
    return 1


def _make_feature_kernel(B, K, P, lens):
    """conv1..conv6 + SELU + BN(eval) + maxpool, channels-on-sublanes layout."""
    (L1, L2, L2p, L3, L4, L4p, L5, L6, L6p) = lens

    def selu(v):
        return SELU_SCALE * jnp.where(
            v > 0.0, v, SELU_ALPHA * (jnp.exp(jnp.minimum(v, 0.0)) - 1.0))

    def conv(a, w, b, l_out):
        # a: (C_in, L_in) time-on-lanes; w: (C_out, K*C_in) taps stacked on the
        # contraction dim; b: (C_out, 1) lane-broadcast bias.
        c_in = a.shape[0]
        if c_in % 8 == 0:
            # fused taps: one MXU matmul, sublane-aligned concat of shifted views
            im2col = jnp.concatenate([a[:, k:k + l_out] for k in range(K)], axis=0)
            y = jnp.dot(w, im2col, preferred_element_type=jnp.float32)
        else:
            # C_in not sublane-aligned (first conv, C_in=4): one matmul per tap
            y = jnp.dot(w[:, :c_in], a[:, 0:l_out],
                        preferred_element_type=jnp.float32)
            for k in range(1, K):
                y = y + jnp.dot(w[:, k * c_in:(k + 1) * c_in], a[:, k:k + l_out],
                                preferred_element_type=jnp.float32)
        return y + b

    def pool(a, lp):
        # maxpool1d(kernel=stride=P), floor mode, along the lane (time) axis.
        # TODO(synk): an even/odd lane max via strided lane views would avoid the
        # two XLU transposes; kept the proven transpose + sublane-split reshape
        # for lowering robustness (XLU has slack vs. the VPU/EUP SELU path).
        t = a[:, : P * lp].T                    # (P*lp, C): time on sublanes
        t = t.reshape(lp, P, t.shape[-1])       # leading/sublane split
        t = jnp.max(t, axis=1)                  # (lp, C)
        return t.T                              # (C, lp)

    def kernel(x_ref, w1_ref, b1_ref, w2_ref, b2_ref, bn1_ref,
               w3_ref, b3_ref, w4_ref, b4_ref, bn2_ref,
               w5_ref, b5_ref, w6_ref, b6_ref, bn3_ref, feat_ref):
        # hoist all parameter loads out of the batch loop (once per grid step)
        w1 = w1_ref[...]; b1 = b1_ref[...]
        w2 = w2_ref[...]; b2 = b2_ref[...]
        w3 = w3_ref[...]; b3 = b3_ref[...]
        w4 = w4_ref[...]; b4 = b4_ref[...]
        w5 = w5_ref[...]; b5 = b5_ref[...]
        w6 = w6_ref[...]; b6 = b6_ref[...]
        bn1 = bn1_ref[...]; bn2 = bn2_ref[...]; bn3 = bn3_ref[...]

        def body(b, carry):
            a = x_ref[b]                                    # (C, L) time on lanes
            # block 1 (BatchNorm0 already folded into conv1's weight/bias)
            a = selu(conv(a, w1, b1, L1))
            a = selu(conv(a, w2, b2, L2))
            a = a * bn1[:, 0:1] + bn1[:, 1:2]               # batch_norm1 (eval)
            a = pool(a, L2p)                                # pool1; dropout = id
            # block 2
            a = selu(conv(a, w3, b3, L3))
            a = selu(conv(a, w4, b4, L4))
            a = a * bn2[:, 0:1] + bn2[:, 1:2]
            a = pool(a, L4p)
            # block 3
            a = selu(conv(a, w5, b5, L5))
            a = selu(conv(a, w6, b6, L6))
            a = a * bn3[:, 0:1] + bn3[:, 1:2]
            a = pool(a, L6p)                                # (H2, L6p) lane-dense
            feat_ref[b] = a
            return carry

        lax.fori_loop(0, B, body, 0)

    return kernel


def _head_kernel(f_ref, w1_ref, b1_ref, w2_ref, b2_ref, w3_ref, b3_ref, out_ref):
    """Linear(F,200) -> ReLU -> Linear(200,200) -> ReLU -> Linear(200,O)."""
    h = jnp.dot(f_ref[0], w1_ref[...], preferred_element_type=jnp.float32) + b1_ref[...]
    h = jnp.maximum(h, 0.0)
    h = jnp.dot(h, w2_ref[...], preferred_element_type=jnp.float32) + b2_ref[...]
    h = jnp.maximum(h, 0.0)
    out_ref[0] = jnp.dot(h, w3_ref[...], preferred_element_type=jnp.float32) + b3_ref[...]


def conv1d_bn_linear_forward(x_ncl, params, *, kernel_size=2, pool_size=2,
                             batch_block=8, head_batch_block=128):
    """x_ncl: (N, C, L) PyTorch layout. Returns (N, O).  Eval-mode forward."""
    N, C, L = x_ncl.shape
    K, P = kernel_size, pool_size
    w1, b1 = params["conv1"]; w2, b2 = params["conv2"]
    w3, b3 = params["conv3"]; w4, b4 = params["conv4"]
    w5, b5 = params["conv5"]; w6, b6 = params["conv6"]
    wl1, bl1 = params["lin1"]; wl2, bl2 = params["lin2"]; wl3, bl3 = params["lin3"]
    H2 = w3.shape[0]
    O = wl3.shape[0]

    # length arithmetic (same formulas as the module's l_out_* helpers)
    L1 = L - K + 1; L2 = L1 - K + 1; L2p = L2 // P
    L3 = L2p - K + 1; L4 = L3 - K + 1; L4p = L4 // P
    L5 = L4p - K + 1; L6 = L5 - K + 1; L6p = L6 // P
    F = H2 * L6p
    assert wl1.shape[1] == F, (wl1.shape, F)

    B = _pick_block(N, batch_block)          # feature kernel batch block
    BH = _pick_block(N, head_batch_block)    # head kernel batch block (MXU rows)

    # ---- glue: parameter re-layout (plain JAX, outside the kernels) ----------
    # TODO(synk): pp.Preprocessor() is an undefined external module in the
    # source repo; it is treated as identity here.
    def bn_affine(g, be, m, v):
        s = g / jnp.sqrt(v + BN_EPS)
        return s, be - m * s

    # fold BatchNorm0 (eval affine) exactly into conv1
    s0, t0 = bn_affine(*params["bn0"])
    w1_eff = w1 * s0[None, :, None]
    b1_eff = b1 + jnp.sum(w1 * t0[None, :, None], axis=(1, 2))

    def conv_w(w):   # (C_out, C_in, K) -> (C_out, K*C_in): taps along contraction
        return jnp.concatenate([w[:, :, k] for k in range(K)], axis=1).astype(jnp.float32)

    def col(v):      # bias as a (C, 1) column -> lane-broadcast in kernel
        return v.reshape(-1, 1).astype(jnp.float32)

    def row(v):
        return v.reshape(1, -1).astype(jnp.float32)

    def bn_pack(g, be, m, v):
        s, t = bn_affine(g, be, m, v)
        return jnp.stack([s, t], axis=1).astype(jnp.float32)       # (C, 2)

    x_f32 = x_ncl.astype(jnp.float32)        # native NCL: C->sublanes, L->lanes

    conv_params = [
        conv_w(w1_eff), col(b1_eff), conv_w(w2), col(b2), bn_pack(*params["bn1"]),
        conv_w(w3), col(b3), conv_w(w4), col(b4), bn_pack(*params["bn2"]),
        conv_w(w5), col(b5), conv_w(w6), col(b6), bn_pack(*params["bn3"]),
    ]

    # ---- kernel 1: conv / SELU / BN / pool feature extractor ------------------
    feats = pl.pallas_call(
        _make_feature_kernel(B, K, P, (L1, L2, L2p, L3, L4, L4p, L5, L6, L6p)),
        out_shape=jax.ShapeDtypeStruct((N, H2, L6p), jnp.float32),
        grid=(N // B,),
        in_specs=[pl.BlockSpec((B, C, L), lambda n: (n, 0, 0))]
                 + [_replicated_spec(a.shape) for a in conv_params],
        out_specs=pl.BlockSpec((B, H2, L6p), lambda n: (n, 0, 0)),
        compiler_params=pltpu.CompilerParams(dimension_semantics=("parallel",)),
    )(x_f32, *conv_params)

    # channel-major flatten == PyTorch .view, since feats is already (N, H2, L6p)
    flat = feats.reshape(N // BH, BH, F)

    head_params = [wl1.T.astype(jnp.float32), row(bl1),
                   wl2.T.astype(jnp.float32), row(bl2),
                   wl3.T.astype(jnp.float32), row(bl3)]

    # ---- kernel 2: batched MLP head (one wide MXU matmul per Linear) ----------
    out = pl.pallas_call(
        _head_kernel,
        out_shape=jax.ShapeDtypeStruct((N // BH, BH, O), jnp.float32),
        grid=(N // BH,),
        in_specs=[pl.BlockSpec((1, BH, F), lambda n: (n, 0, 0))]
                 + [_replicated_spec(a.shape) for a in head_params],
        out_specs=pl.BlockSpec((1, BH, O), lambda n: (n, 0, 0)),
        compiler_params=pltpu.CompilerParams(dimension_semantics=("parallel",)),
    )(flat, *head_params)

    return out.reshape(N, O)


def ref_forward(x_ncl, params, pool_size=2):
    """Pure-JAX reference mirroring the PyTorch eval-mode forward exactly."""
    hp = jax.lax.Precision.HIGHEST

    def bn(x, p):
        g, be, m, v = p
        s = g / jnp.sqrt(v + BN_EPS)
        return (x - m[None, :, None]) * s[None, :, None] + be[None, :, None]

    def conv(x, p):
        w, b = p
        y = jax.lax.conv_general_dilated(
            x, w, (1,), "VALID",
            dimension_numbers=("NCH", "OIH", "NCH"), precision=hp)
        return y + b[None, :, None]

    def pool(x):
        n, c, l = x.shape
        lp = l // pool_size
        return jnp.max(x[:, :, : lp * pool_size].reshape(n, c, lp, pool_size), axis=-1)

    selu = jax.nn.selu
    x = bn(x_ncl, params["bn0"])                                   # preprocess = id
    x = pool(bn(selu(conv(selu(conv(x, params["conv1"])), params["conv2"])), params["bn1"]))
    x = pool(bn(selu(conv(selu(conv(x, params["conv3"])), params["conv4"])), params["bn2"]))
    x = pool(bn(selu(conv(selu(conv(x, params["conv5"])), params["conv6"])), params["bn3"]))
    flat = x.reshape(x.shape[0], -1)                               # channel-major view
    w1, b1 = params["lin1"]; w2, b2 = params["lin2"]; w3, b3 = params["lin3"]
    h = jnp.maximum(jnp.dot(flat, w1.T, precision=hp) + b1, 0.0)
    h = jnp.maximum(jnp.dot(h, w2.T, precision=hp) + b2, 0.0)
    return jnp.dot(h, w3.T, precision=hp) + b3


if __name__ == "__main__":
    # Small shapes consistent with the module (the original hardcodes L=3750;
    # here a short sequence is used and lout is recomputed the same way).
    N, C, L = 4, 4, 64           # batch, input_size (channels), seq length
    H, O = 32, 8                 # hidden_size, output_size
    H2, HD = H // 2, 200
    K, P = 2, 2

    L1 = L - K + 1; L2 = L1 - K + 1; L2p = L2 // P
    L3 = L2p - K + 1; L4 = L3 - K + 1; L4p = L4 // P
    L5 = L4p - K + 1; L6 = L5 - K + 1; L6p = L6 // P

    key = jax.random.PRNGKey(0)
    kit = iter(jax.random.split(key, 16))

    def make_conv(k, co, ci):
        k1, k2 = jax.random.split(k)
        s = 1.0 / math.sqrt(ci * K)
        return (jax.random.normal(k1, (co, ci, K), jnp.float32) * s,
                jax.random.normal(k2, (co,), jnp.float32) * s)

    def make_lin(k, co, ci):
        k1, k2 = jax.random.split(k)
        s = 1.0 / math.sqrt(ci)
        return (jax.random.normal(k1, (co, ci), jnp.float32) * s,
                jax.random.normal(k2, (co,), jnp.float32) * s)

    def make_bn(k, ch):
        k1, k2, k3, k4 = jax.random.split(k, 4)
        return (1.0 + 0.1 * jax.random.normal(k1, (ch,), jnp.float32),   # gamma
                0.1 * jax.random.normal(k2, (ch,), jnp.float32),          # beta
                0.1 * jax.random.normal(k3, (ch,), jnp.float32),          # running mean
                jax.random.uniform(k4, (ch,), jnp.float32, 0.5, 1.5))     # running var

    params = {
        "bn0": make_bn(next(kit), C),
        "conv1": make_conv(next(kit), H, C),
        "conv2": make_conv(next(kit), H, H),
        "bn1": make_bn(next(kit), H),
        "conv3": make_conv(next(kit), H2, H),
        "conv4": make_conv(next(kit), H2, H2),
        "bn2": make_bn(next(kit), H2),
        "conv5": make_conv(next(kit), H2, H2),
        "conv6": make_conv(next(kit), H2, H2),
        "bn3": make_bn(next(kit), H2),
        "lin1": make_lin(next(kit), HD, H2 * L6p),
        "lin2": make_lin(next(kit), HD, HD),
        "lin3": make_lin(next(kit), O, HD),
    }
    x = jax.random.normal(next(kit), (N, C, L), jnp.float32)      # PyTorch NCL layout

    y = conv1d_bn_linear_forward(x, params, kernel_size=K, pool_size=P)
    y = jax.block_until_ready(y)

    y_ref = ref_forward(x, params, pool_size=P)
    assert y.shape == (N, O)
    assert jnp.allclose(y, y_ref, atol=2e-2, rtol=2e-2), (y, y_ref)

    print("KERNEL_OK")
</pallas_src>

<mosaic_0001>
module attributes {stable_mosaic.version = 11 : i64} {
  func.func @kernel(%arg0: i32, %arg1: memref<2x4x64xf32, #tpu.memory_space<vmem>>, %arg2: memref<32x8xf32, #tpu.memory_space<vmem>>, %arg3: memref<32x1xf32, #tpu.memory_space<vmem>>, %arg4: memref<32x64xf32, #tpu.memory_space<vmem>>, %arg5: memref<32x1xf32, #tpu.memory_space<vmem>>, %arg6: memref<32x2xf32, #tpu.memory_space<vmem>>, %arg7: memref<16x64xf32, #tpu.memory_space<vmem>>, %arg8: memref<16x1xf32, #tpu.memory_space<vmem>>, %arg9: memref<16x32xf32, #tpu.memory_space<vmem>>, %arg10: memref<16x1xf32, #tpu.memory_space<vmem>>, %arg11: memref<16x2xf32, #tpu.memory_space<vmem>>, %arg12: memref<16x32xf32, #tpu.memory_space<vmem>>, %arg13: memref<16x1xf32, #tpu.memory_space<vmem>>, %arg14: memref<16x32xf32, #tpu.memory_space<vmem>>, %arg15: memref<16x1xf32, #tpu.memory_space<vmem>>, %arg16: memref<16x2xf32, #tpu.memory_space<vmem>>, %arg17: memref<2x16x6xf32, #tpu.memory_space<vmem>>) attributes {dimension_semantics = [#tpu.dimension_semantics<parallel>], iteration_bounds = array<i64: 2>, scalar_prefetch = 0 : i64, scratch_operands = 0 : i64, tpu.core_type = #tpu.core_type<tc>, window_params = [{transform_indices = @transform_0, window_bounds = array<i64: 2, 4, 64>}, {pipeline_mode = #tpu.pipeline_mode<synchronous>, transform_indices = @transform_1, window_bounds = array<i64: 32, 8>}, {pipeline_mode = #tpu.pipeline_mode<synchronous>, transform_indices = @transform_2, window_bounds = array<i64: 32, 1>}, {pipeline_mode = #tpu.pipeline_mode<synchronous>, transform_indices = @transform_3, window_bounds = array<i64: 32, 64>}, {pipeline_mode = #tpu.pipeline_mode<synchronous>, transform_indices = @transform_4, window_bounds = array<i64: 32, 1>}, {pipeline_mode = #tpu.pipeline_mode<synchronous>, transform_indices = @transform_5, window_bounds = array<i64: 32, 2>}, {pipeline_mode = #tpu.pipeline_mode<synchronous>, transform_indices = @transform_6, window_bounds = array<i64: 16, 64>}, {pipeline_mode = #tpu.pipeline_mode<synchronous>, transform_indices = @transform_7, window_bounds = array<i64: 16, 1>}, {pipeline_mode = #tpu.pipeline_mode<synchronous>, transform_indices = @transform_8, window_bounds = array<i64: 16, 32>}, {pipeline_mode = #tpu.pipeline_mode<synchronous>, transform_indices = @transform_9, window_bounds = array<i64: 16, 1>}, {pipeline_mode = #tpu.pipeline_mode<synchronous>, transform_indices = @transform_10, window_bounds = array<i64: 16, 2>}, {pipeline_mode = #tpu.pipeline_mode<synchronous>, transform_indices = @transform_11, window_bounds = array<i64: 16, 32>}, {pipeline_mode = #tpu.pipeline_mode<synchronous>, transform_indices = @transform_12, window_bounds = array<i64: 16, 1>}, {pipeline_mode = #tpu.pipeline_mode<synchronous>, transform_indices = @transform_13, window_bounds = array<i64: 16, 32>}, {pipeline_mode = #tpu.pipeline_mode<synchronous>, transform_indices = @transform_14, window_bounds = array<i64: 16, 1>}, {pipeline_mode = #tpu.pipeline_mode<synchronous>, transform_indices = @transform_15, window_bounds = array<i64: 16, 2>}, {transform_indices = @transform_16, window_bounds = array<i64: 2, 16, 6>}]} {
    %c0 = arith.constant 0 : index
    %c0_0 = arith.constant 0 : index
    %0 = vector.load %arg2[%c0, %c0_0] : memref<32x8xf32, #tpu.memory_space<vmem>>, vector<32x8xf32>
    %c0_1 = arith.constant 0 : index
    %c0_2 = arith.constant 0 : index
    %1 = vector.load %arg3[%c0_1, %c0_2] : memref<32x1xf32, #tpu.memory_space<vmem>>, vector<32x1xf32>
    %c0_3 = arith.constant 0 : index
    %c0_4 = arith.constant 0 : index
    %2 = vector.load %arg4[%c0_3, %c0_4] : memref<32x64xf32, #tpu.memory_space<vmem>>, vector<32x64xf32>
    %c0_5 = arith.constant 0 : index
    %c0_6 = arith.constant 0 : index
    %3 = vector.load %arg5[%c0_5, %c0_6] : memref<32x1xf32, #tpu.memory_space<vmem>>, vector<32x1xf32>
    %c0_7 = arith.constant 0 : index
    %c0_8 = arith.constant 0 : index
    %4 = vector.load %arg7[%c0_7, %c0_8] : memref<16x64xf32, #tpu.memory_space<vmem>>, vector<16x64xf32>
    %c0_9 = arith.constant 0 : index
    %c0_10 = arith.constant 0 : index
    %5 = vector.load %arg8[%c0_9, %c0_10] : memref<16x1xf32, #tpu.memory_space<vmem>>, vector<16x1xf32>
    %c0_11 = arith.constant 0 : index
    %c0_12 = arith.constant 0 : index
    %6 = vector.load %arg9[%c0_11, %c0_12] : memref<16x32xf32, #tpu.memory_space<vmem>>, vector<16x32xf32>
    %c0_13 = arith.constant 0 : index
    %c0_14 = arith.constant 0 : index
    %7 = vector.load %arg10[%c0_13, %c0_14] : memref<16x1xf32, #tpu.memory_space<vmem>>, vector<16x1xf32>
    %c0_15 = arith.constant 0 : index
    %c0_16 = arith.constant 0 : index
    %8 = vector.load %arg12[%c0_15, %c0_16] : memref<16x32xf32, #tpu.memory_space<vmem>>, vector<16x32xf32>
    %c0_17 = arith.constant 0 : index
    %c0_18 = arith.constant 0 : index
    %9 = vector.load %arg13[%c0_17, %c0_18] : memref<16x1xf32, #tpu.memory_space<vmem>>, vector<16x1xf32>
    %c0_19 = arith.constant 0 : index
    %c0_20 = arith.constant 0 : index
    %10 = vector.load %arg14[%c0_19, %c0_20] : memref<16x32xf32, #tpu.memory_space<vmem>>, vector<16x32xf32>
    %c0_21 = arith.constant 0 : index
    %c0_22 = arith.constant 0 : index
    %11 = vector.load %arg15[%c0_21, %c0_22] : memref<16x1xf32, #tpu.memory_space<vmem>>, vector<16x1xf32>
    %c0_23 = arith.constant 0 : index
    %c0_24 = arith.constant 0 : index
    %12 = vector.load %arg6[%c0_23, %c0_24] : memref<32x2xf32, #tpu.memory_space<vmem>>, vector<32x2xf32>
    %c0_25 = arith.constant 0 : index
    %c0_26 = arith.constant 0 : index
    %13 = vector.load %arg11[%c0_25, %c0_26] : memref<16x2xf32, #tpu.memory_space<vmem>>, vector<16x2xf32>
    %c0_27 = arith.constant 0 : index
    %c0_28 = arith.constant 0 : index
    %14 = vector.load %arg16[%c0_27, %c0_28] : memref<16x2xf32, #tpu.memory_space<vmem>>, vector<16x2xf32>
    %c0_i32 = arith.constant 0 : i32
    %c2_i32 = arith.constant 2 : i32
    %15 = arith.addi %c0_i32, %c2_i32 : i32
    %c1_i32 = arith.constant 1 : i32
    scf.for %arg18 = %c0_i32 to %15 step %c1_i32  : i32 {
      %16 = arith.index_cast %arg18 : i32 to index
      %c0_30 = arith.constant 0 : index
      %c0_31 = arith.constant 0 : index
      %17 = vector.load %arg1[%16, %c0_30, %c0_31] : memref<2x4x64xf32, #tpu.memory_space<vmem>>, vector<1x4x64xf32>
      %18 = vector.shape_cast %17 : vector<1x4x64xf32> to vector<4x64xf32>
      %19 = vector.extract_strided_slice %0 {offsets = [0, 0], sizes = [32, 4], strides = [1, 1]} : vector<32x8xf32> to vector<32x4xf32>
      %20 = vector.extract_strided_slice %18 {offsets = [0, 0], sizes = [4, 63], strides = [1, 1]} : vector<4x64xf32> to vector<4x63xf32>
      %cst = arith.constant dense<0.000000e+00> : vector<32x63xf32>
      %21 = tpu.matmul %19, %20, %cst {dimension_numbers = #tpu.dot_dimension_numbers<[1], [0], [0], [1], [0, 0, 1, 1], [], []>} : vector<32x4xf32>, vector<4x63xf32>, vector<32x63xf32> -> vector<32x63xf32>
      %22 = vector.extract_strided_slice %0 {offsets = [0, 4], sizes = [32, 4], strides = [1, 1]} : vector<32x8xf32> to vector<32x4xf32>
      %23 = vector.extract_strided_slice %18 {offsets = [0, 1], sizes = [4, 63], strides = [1, 1]} : vector<4x64xf32> to vector<4x63xf32>
      %cst_32 = arith.constant dense<0.000000e+00> : vector<32x63xf32>
      %24 = tpu.matmul %22, %23, %cst_32 {dimension_numbers = #tpu.dot_dimension_numbers<[1], [0], [0], [1], [0, 0, 1, 1], [], []>} : vector<32x4xf32>, vector<4x63xf32>, vector<32x63xf32> -> vector<32x63xf32>
      %25 = arith.addf %21, %24 : vector<32x63xf32>
      %26 = vector.broadcast %1 : vector<32x1xf32> to vector<32x63xf32>
      %27 = arith.addf %25, %26 : vector<32x63xf32>
      %cst_33 = arith.constant 0.000000e+00 : f32
      %28 = vector.broadcast %cst_33 : f32 to vector<32x63xf32>
      %29 = arith.cmpf ogt, %27, %28 : vector<32x63xf32>
      %cst_34 = arith.constant 0.000000e+00 : f32
      %30 = vector.broadcast %cst_34 : f32 to vector<32x63xf32>
      %31 = arith.minimumf %27, %30 : vector<32x63xf32>
      %32 = math.exp %31 : vector<32x63xf32>
      %cst_35 = arith.constant 1.000000e+00 : f32
      %33 = vector.broadcast %cst_35 : f32 to vector<32x63xf32>
      %34 = arith.subf %32, %33 : vector<32x63xf32>
      %cst_36 = arith.constant 1.67326319 : f32
      %35 = vector.broadcast %cst_36 : f32 to vector<32x63xf32>
      %36 = arith.mulf %35, %34 : vector<32x63xf32>
      %37 = arith.select %29, %27, %36 : vector<32x63xi1>, vector<32x63xf32>
      %cst_37 = arith.constant 1.05070102 : f32
      %38 = vector.broadcast %cst_37 : f32 to vector<32x63xf32>
      %39 = arith.mulf %38, %37 : vector<32x63xf32>
      %40 = vector.extract_strided_slice %39 {offsets = [0, 0], sizes = [32, 62], strides = [1, 1]} : vector<32x63xf32> to vector<32x62xf32>
      %41 = vector.extract_strided_slice %39 {offsets = [0, 1], sizes = [32, 62], strides = [1, 1]} : vector<32x63xf32> to vector<32x62xf32>
      %42 = tpu.concatenate %40, %41 in 0 : vector<32x62xf32>, vector<32x62xf32> -> vector<64x62xf32>
      %cst_38 = arith.constant dense<0.000000e+00> : vector<32x62xf32>
      %43 = tpu.matmul %2, %42, %cst_38 {dimension_numbers = #tpu.dot_dimension_numbers<[1], [0], [0], [1], [0, 0, 1, 1], [], []>} : vector<32x64xf32>, vector<64x62xf32>, vector<32x62xf32> -> vector<32x62xf32>
      %44 = vector.broadcast %3 : vector<32x1xf32> to vector<32x62xf32>
      %45 = arith.addf %43, %44 : vector<32x62xf32>
      %cst_39 = arith.constant 0.000000e+00 : f32
      %46 = vector.broadcast %cst_39 : f32 to vector<32x62xf32>
      %47 = arith.cmpf ogt, %45, %46 : vector<32x62xf32>
      %cst_40 = arith.constant 0.000000e+00 : f32
      %48 = vector.broadcast %cst_40 : f32 to vector<32x62xf32>
      %49 = arith.minimumf %45, %48 : vector<32x62xf32>
      %50 = math.exp %49 : vector<32x62xf32>
      %cst_41 = arith.constant 1.000000e+00 : f32
      %51 = vector.broadcast %cst_41 : f32 to vector<32x62xf32>
      %52 = arith.subf %50, %51 : vector<32x62xf32>
      %cst_42 = arith.constant 1.67326319 : f32
      %53 = vector.broadcast %cst_42 : f32 to vector<32x62xf32>
      %54 = arith.mulf %53, %52 : vector<32x62xf32>
      %55 = arith.select %47, %45, %54 : vector<32x62xi1>, vector<32x62xf32>
      %cst_43 = arith.constant 1.05070102 : f32
      %56 = vector.broadcast %cst_43 : f32 to vector<32x62xf32>
      %57 = arith.mulf %56, %55 : vector<32x62xf32>
      %58 = vector.extract_strided_slice %12 {offsets = [0, 0], sizes = [32, 1], strides = [1, 1]} : vector<32x2xf32> to vector<32x1xf32>
      %59 = vector.broadcast %58 : vector<32x1xf32> to vector<32x62xf32>
      %60 = arith.mulf %57, %59 : vector<32x62xf32>
      %61 = vector.extract_strided_slice %12 {offsets = [0, 1], sizes = [32, 1], strides = [1, 1]} : vector<32x2xf32> to vector<32x1xf32>
      %62 = vector.broadcast %61 : vector<32x1xf32> to vector<32x62xf32>
      %63 = arith.addf %60, %62 : vector<32x62xf32>
      %64 = tpu.transpose %63, [1, 0] : vector<32x62xf32> -> vector<62x32xf32>
      %65 = vector.shape_cast %64 : vector<62x32xf32> to vector<31x2x32xf32>
      %cst_44 = arith.constant dense<0xFF800000> : vector<31x32xf32>
      %66 = vector.multi_reduction <maximumf>, %65, %cst_44 [1] : vector<31x2x32xf32> to vector<31x32xf32>
      %67 = tpu.transpose %66, [1, 0] : vector<31x32xf32> -> vector<32x31xf32>
      %68 = vector.extract_strided_slice %67 {offsets = [0, 0], sizes = [32, 30], strides = [1, 1]} : vector<32x31xf32> to vector<32x30xf32>
      %69 = vector.extract_strided_slice %67 {offsets = [0, 1], sizes = [32, 30], strides = [1, 1]} : vector<32x31xf32> to vector<32x30xf32>
      %70 = tpu.concatenate %68, %69 in 0 : vector<32x30xf32>, vector<32x30xf32> -> vector<64x30xf32>
      %cst_45 = arith.constant dense<0.000000e+00> : vector<16x30xf32>
      %71 = tpu.matmul %4, %70, %cst_45 {dimension_numbers = #tpu.dot_dimension_numbers<[1], [0], [0], [1], [0, 0, 1, 1], [], []>} : vector<16x64xf32>, vector<64x30xf32>, vector<16x30xf32> -> vector<16x30xf32>
      %72 = vector.broadcast %5 : vector<16x1xf32> to vector<16x30xf32>
      %73 = arith.addf %71, %72 : vector<16x30xf32>
      %cst_46 = arith.constant 0.000000e+00 : f32
      %74 = vector.broadcast %cst_46 : f32 to vector<16x30xf32>
      %75 = arith.cmpf ogt, %73, %74 : vector<16x30xf32>
      %cst_47 = arith.constant 0.000000e+00 : f32
      %76 = vector.broadcast %cst_47 : f32 to vector<16x30xf32>
      %77 = arith.minimumf %73, %76 : vector<16x30xf32>
      %78 = math.exp %77 : vector<16x30xf32>
      %cst_48 = arith.constant 1.000000e+00 : f32
      %79 = vector.broadcast %cst_48 : f32 to vector<16x30xf32>
      %80 = arith.subf %78, %79 : vector<16x30xf32>
      %cst_49 = arith.constant 1.67326319 : f32
      %81 = vector.broadcast %cst_49 : f32 to vector<16x30xf32>
      %82 = arith.mulf %81, %80 : vector<16x30xf32>
      %83 = arith.select %75, %73, %82 : vector<16x30xi1>, vector<16x30xf32>
      %cst_50 = arith.constant 1.05070102 : f32
      %84 = vector.broadcast %cst_50 : f32 to vector<16x30xf32>
      %85 = arith.mulf %84, %83 : vector<16x30xf32>
      %86 = vector.extract_strided_slice %85 {offsets = [0, 0], sizes = [16, 29], strides = [1, 1]} : vector<16x30xf32> to vector<16x29xf32>
      %87 = vector.extract_strided_slice %85 {offsets = [0, 1], sizes = [16, 29], strides = [1, 1]} : vector<16x30xf32> to vector<16x29xf32>
      %88 = tpu.concatenate %86, %87 in 0 : vector<16x29xf32>, vector<16x29xf32> -> vector<32x29xf32>
      %cst_51 = arith.constant dense<0.000000e+00> : vector<16x29xf32>
      %89 = tpu.matmul %6, %88, %cst_51 {dimension_numbers = #tpu.dot_dimension_numbers<[1], [0], [0], [1], [0, 0, 1, 1], [], []>} : vector<16x32xf32>, vector<32x29xf32>, vector<16x29xf32> -> vector<16x29xf32>
      %90 = vector.broadcast %7 : vector<16x1xf32> to vector<16x29xf32>
      %91 = arith.addf %89, %90 : vector<16x29xf32>
      %cst_52 = arith.constant 0.000000e+00 : f32
      %92 = vector.broadcast %cst_52 : f32 to vector<16x29xf32>
      %93 = arith.cmpf ogt, %91, %92 : vector<16x29xf32>
      %cst_53 = arith.constant 0.000000e+00 : f32
      %94 = vector.broadcast %cst_53 : f32 to vector<16x29xf32>
      %95 = arith.minimumf %91, %94 : vector<16x29xf32>
      %96 = math.exp %95 : vector<16x29xf32>
      %cst_54 = arith.constant 1.000000e+00 : f32
      %97 = vector.broadcast %cst_54 : f32 to vector<16x29xf32>
      %98 = arith.subf %96, %97 : vector<16x29xf32>
      %cst_55 = arith.constant 1.67326319 : f32
      %99 = vector.broadcast %cst_55 : f32 to vector<16x29xf32>
      %100 = arith.mulf %99, %98 : vector<16x29xf32>
      %101 = arith.select %93, %91, %100 : vector<16x29xi1>, vector<16x29xf32>
      %cst_56 = arith.constant 1.05070102 : f32
      %102 = vector.broadcast %cst_56 : f32 to vector<16x29xf32>
      %103 = arith.mulf %102, %101 : vector<16x29xf32>
      %104 = vector.extract_strided_slice %13 {offsets = [0, 0], sizes = [16, 1], strides = [1, 1]} : vector<16x2xf32> to vector<16x1xf32>
      %105 = vector.broadcast %104 : vector<16x1xf32> to vector<16x29xf32>
      %106 = arith.mulf %103, %105 : vector<16x29xf32>
      %107 = vector.extract_strided_slice %13 {offsets = [0, 1], sizes = [16, 1], strides = [1, 1]} : vector<16x2xf32> to vector<16x1xf32>
      %108 = vector.broadcast %107 : vector<16x1xf32> to vector<16x29xf32>
      %109 = arith.addf %106, %108 : vector<16x29xf32>
      %110 = vector.extract_strided_slice %109 {offsets = [0, 0], sizes = [16, 28], strides = [1, 1]} : vector<16x29xf32> to vector<16x28xf32>
      %111 = tpu.transpose %110, [1, 0] : vector<16x28xf32> -> vector<28x16xf32>
      %112 = vector.shape_cast %111 : vector<28x16xf32> to vector<14x2x16xf32>
      %cst_57 = arith.constant dense<0xFF800000> : vector<14x16xf32>
      %113 = vector.multi_reduction <maximumf>, %112, %cst_57 [1] : vector<14x2x16xf32> to vector<14x16xf32>
      %114 = tpu.transpose %113, [1, 0] : vector<14x16xf32> -> vector<16x14xf32>
      %115 = vector.extract_strided_slice %114 {offsets = [0, 0], sizes = [16, 13], strides = [1, 1]} : vector<16x14xf32> to vector<16x13xf32>
      %116 = vector.extract_strided_slice %114 {offsets = [0, 1], sizes = [16, 13], strides = [1, 1]} : vector<16x14xf32> to vector<16x13xf32>
      %117 = tpu.concatenate %115, %116 in 0 : vector<16x13xf32>, vector<16x13xf32> -> vector<32x13xf32>
      %cst_58 = arith.constant dense<0.000000e+00> : vector<16x13xf32>
      %118 = tpu.matmul %8, %117, %cst_58 {dimension_numbers = #tpu.dot_dimension_numbers<[1], [0], [0], [1], [0, 0, 1, 1], [], []>} : vector<16x32xf32>, vector<32x13xf32>, vector<16x13xf32> -> vector<16x13xf32>
      %119 = vector.broadcast %9 : vector<16x1xf32> to vector<16x13xf32>
      %120 = arith.addf %118, %119 : vector<16x13xf32>
      %cst_59 = arith.constant 0.000000e+00 : f32
      %121 = vector.broadcast %cst_59 : f32 to vector<16x13xf32>
      %122 = arith.cmpf ogt, %120, %121 : vector<16x13xf32>
      %cst_60 = arith.constant 0.000000e+00 : f32
      %123 = vector.broadcast %cst_60 : f32 to vector<16x13xf32>
      %124 = arith.minimumf %120, %123 : vector<16x13xf32>
      %125 = math.exp %124 : vector<16x13xf32>
      %cst_61 = arith.constant 1.000000e+00 : f32
      %126 = vector.broadcast %cst_61 : f32 to vector<16x13xf32>
      %127 = arith.subf %125, %126 : vector<16x13xf32>
      %cst_62 = arith.constant 1.67326319 : f32
      %128 = vector.broadcast %cst_62 : f32 to vector<16x13xf32>
      %129 = arith.mulf %128, %127 : vector<16x13xf32>
      %130 = arith.select %122, %120, %129 : vector<16x13xi1>, vector<16x13xf32>
      %cst_63 = arith.constant 1.05070102 : f32
      %131 = vector.broadcast %cst_63 : f32 to vector<16x13xf32>
      %132 = arith.mulf %131, %130 : vector<16x13xf32>
      %133 = vector.extract_strided_slice %132 {offsets = [0, 0], sizes = [16, 12], strides = [1, 1]} : vector<16x13xf32> to vector<16x12xf32>
      %134 = vector.extract_strided_slice %132 {offsets = [0, 1], sizes = [16, 12], strides = [1, 1]} : vector<16x13xf32> to vector<16x12xf32>
      %135 = tpu.concatenate %133, %134 in 0 : vector<16x12xf32>, vector<16x12xf32> -> vector<32x12xf32>
      %cst_64 = arith.constant dense<0.000000e+00> : vector<16x12xf32>
      %136 = tpu.matmul %10, %135, %cst_64 {dimension_numbers = #tpu.dot_dimension_numbers<[1], [0], [0], [1], [0, 0, 1, 1], [], []>} : vector<16x32xf32>, vector<32x12xf32>, vector<16x12xf32> -> vector<16x12xf32>
      %137 = vector.broadcast %11 : vector<16x1xf32> to vector<16x12xf32>
      %138 = arith.addf %136, %137 : vector<16x12xf32>
      %cst_65 = arith.constant 0.000000e+00 : f32
      %139 = vector.broadcast %cst_65 : f32 to vector<16x12xf32>
      %140 = arith.cmpf ogt, %138, %139 : vector<16x12xf32>
      %cst_66 = arith.constant 0.000000e+00 : f32
      %141 = vector.broadcast %cst_66 : f32 to vector<16x12xf32>
      %142 = arith.minimumf %138, %141 : vector<16x12xf32>
      %143 = math.exp %142 : vector<16x12xf32>
      %cst_67 = arith.constant 1.000000e+00 : f32
      %144 = vector.broadcast %cst_67 : f32 to vector<16x12xf32>
      %145 = arith.subf %143, %144 : vector<16x12xf32>
      %cst_68 = arith.constant 1.67326319 : f32
      %146 = vector.broadcast %cst_68 : f32 to vector<16x12xf32>
      %147 = arith.mulf %146, %145 : vector<16x12xf32>
      %148 = arith.select %140, %138, %147 : vector<16x12xi1>, vector<16x12xf32>
      %cst_69 = arith.constant 1.05070102 : f32
      %149 = vector.broadcast %cst_69 : f32 to vector<16x12xf32>
      %150 = arith.mulf %149, %148 : vector<16x12xf32>
      %151 = vector.extract_strided_slice %14 {offsets = [0, 0], sizes = [16, 1], strides = [1, 1]} : vector<16x2xf32> to vector<16x1xf32>
      %152 = vector.broadcast %151 : vector<16x1xf32> to vector<16x12xf32>
      %153 = arith.mulf %150, %152 : vector<16x12xf32>
      %154 = vector.extract_strided_slice %14 {offsets = [0, 1], sizes = [16, 1], strides = [1, 1]} : vector<16x2xf32> to vector<16x1xf32>
      %155 = vector.broadcast %154 : vector<16x1xf32> to vector<16x12xf32>
      %156 = arith.addf %153, %155 : vector<16x12xf32>
      %157 = tpu.transpose %156, [1, 0] : vector<16x12xf32> -> vector<12x16xf32>
      %158 = vector.shape_cast %157 : vector<12x16xf32> to vector<6x2x16xf32>
      %cst_70 = arith.constant dense<0xFF800000> : vector<6x16xf32>
      %159 = vector.multi_reduction <maximumf>, %158, %cst_70 [1] : vector<6x2x16xf32> to vector<6x16xf32>
      %160 = tpu.transpose %159, [1, 0] : vector<6x16xf32> -> vector<16x6xf32>
      %161 = arith.index_cast %arg18 : i32 to index
      %c0_71 = arith.constant 0 : index
      %c0_72 = arith.constant 0 : index
      %162 = vector.load %arg17[%161, %c0_71, %c0_72] : memref<2x16x6xf32, #tpu.memory_space<vmem>>, vector<1x16x6xf32>
      %163 = vector.shape_cast %162 : vector<1x16x6xf32> to vector<16x6xf32>
      %164 = vector.shape_cast %160 : vector<16x6xf32> to vector<1x16x6xf32>
      tpu.vector_store %arg17[%161, %c0_71, %c0_72], %164 {strides = array<i32>} : memref<2x16x6xf32, #tpu.memory_space<vmem>>, vector<1x16x6xf32>,
    }
    %c2_i32_29 = arith.constant 2 : i32
    return
  }
  func.func @transform_0(%arg0: i32) -> (i32, i32, i32) {
    %c0_i32 = arith.constant 0 : i32
    %c0_i32_0 = arith.constant 0 : i32
    %c0_i32_1 = arith.constant 0 : i32
    return %arg0, %c0_i32, %c0_i32_0 : i32, i32, i32
  }
  func.func @transform_1(%arg0: i32) -> (i32, i32) {
    %c0_i32 = arith.constant 0 : i32
    %c0_i32_0 = arith.constant 0 : i32
    %c0_i32_1 = arith.constant 0 : i32
    return %c0_i32, %c0_i32_0 : i32, i32
  }
  func.func @transform_2(%arg0: i32) -> (i32, i32) {
    %c0_i32 = arith.constant 0 : i32
    %c0_i32_0 = arith.constant 0 : i32
    %c0_i32_1 = arith.constant 0 : i32
    return %c0_i32, %c0_i32_0 : i32, i32
  }
  func.func @transform_3(%arg0: i32) -> (i32, i32) {
    %c0_i32 = arith.constant 0 : i32
    %c0_i32_0 = arith.constant 0 : i32
    %c0_i32_1 = arith.constant 0 : i32
    return %c0_i32, %c0_i32_0 : i32, i32
  }
  func.func @transform_4(%arg0: i32) -> (i32, i32) {
    %c0_i32 = arith.constant 0 : i32
    %c0_i32_0 = arith.constant 0 : i32
    %c0_i32_1 = arith.constant 0 : i32
    return %c0_i32, %c0_i32_0 : i32, i32
  }
  func.func @transform_5(%arg0: i32) -> (i32, i32) {
    %c0_i32 = arith.constant 0 : i32
    %c0_i32_0 = arith.constant 0 : i32
    %c0_i32_1 = arith.constant 0 : i32
    return %c0_i32, %c0_i32_0 : i32, i32
  }
  func.func @transform_6(%arg0: i32) -> (i32, i32) {
    %c0_i32 = arith.constant 0 : i32
    %c0_i32_0 = arith.constant 0 : i32
    %c0_i32_1 = arith.constant 0 : i32
    return %c0_i32, %c0_i32_0 : i32, i32
  }
  func.func @transform_7(%arg0: i32) -> (i32, i32) {
    %c0_i32 = arith.constant 0 : i32
    %c0_i32_0 = arith.constant 0 : i32
    %c0_i32_1 = arith.constant 0 : i32
    return %c0_i32, %c0_i32_0 : i32, i32
  }
  func.func @transform_8(%arg0: i32) -> (i32, i32) {
    %c0_i32 = arith.constant 0 : i32
    %c0_i32_0 = arith.constant 0 : i32
    %c0_i32_1 = arith.constant 0 : i32
    return %c0_i32, %c0_i32_0 : i32, i32
  }
  func.func @transform_9(%arg0: i32) -> (i32, i32) {
    %c0_i32 = arith.constant 0 : i32
    %c0_i32_0 = arith.constant 0 : i32
    %c0_i32_1 = arith.constant 0 : i32
    return %c0_i32, %c0_i32_0 : i32, i32
  }
  func.func @transform_10(%arg0: i32) -> (i32, i32) {
    %c0_i32 = arith.constant 0 : i32
    %c0_i32_0 = arith.constant 0 : i32
    %c0_i32_1 = arith.constant 0 : i32
    return %c0_i32, %c0_i32_0 : i32, i32
  }
  func.func @transform_11(%arg0: i32) -> (i32, i32) {
    %c0_i32 = arith.constant 0 : i32
    %c0_i32_0 = arith.constant 0 : i32
    %c0_i32_1 = arith.constant 0 : i32
    return %c0_i32, %c0_i32_0 : i32, i32
  }
  func.func @transform_12(%arg0: i32) -> (i32, i32) {
    %c0_i32 = arith.constant 0 : i32
    %c0_i32_0 = arith.constant 0 : i32
    %c0_i32_1 = arith.constant 0 : i32
    return %c0_i32, %c0_i32_0 : i32, i32
  }
  func.func @transform_13(%arg0: i32) -> (i32, i32) {
    %c0_i32 = arith.constant 0 : i32
    %c0_i32_0 = arith.constant 0 : i32
    %c0_i32_1 = arith.constant 0 : i32
    return %c0_i32, %c0_i32_0 : i32, i32
  }
  func.func @transform_14(%arg0: i32) -> (i32, i32) {
    %c0_i32 = arith.constant 0 : i32
    %c0_i32_0 = arith.constant 0 : i32
    %c0_i32_1 = arith.constant 0 : i32
    return %c0_i32, %c0_i32_0 : i32, i32
  }
  func.func @transform_15(%arg0: i32) -> (i32, i32) {
    %c0_i32 = arith.constant 0 : i32
    %c0_i32_0 = arith.constant 0 : i32
    %c0_i32_1 = arith.constant 0 : i32
    return %c0_i32, %c0_i32_0 : i32, i32
  }
  func.func @transform_16(%arg0: i32) -> (i32, i32, i32) {
    %c0_i32 = arith.constant 0 : i32
    %c0_i32_0 = arith.constant 0 : i32
    %c0_i32_1 = arith.constant 0 : i32
    return %arg0, %c0_i32, %c0_i32_0 : i32, i32, i32
  }
}

</mosaic_0001>

<llo_original>
// kernel: tpu_custom_call.1
$region0: #{tpu_custom_call.1}
  #allocation0 [shape = 'u32[]', space=smem, size = 0x4, offset = 0x4, fixed_abs, tag = 'smem constant byte address 0x4 - core index']
  #allocation1 [shape = 'u32[144,128]{1,0:T(1,128)}', space=vmem, size = 0x12000, scoped, tag = 'internal scratch']
  %s0 = inlined_call_operand.vmem [shape: f32[4,4,64], index: 0, kind: input, shape index: {}]
  %s1 = inlined_call_operand.vmem [shape: f32[32,8], index: 1, kind: input, shape index: {}]
  %s2 = inlined_call_operand.vmem [shape: f32[32,1], index: 2, kind: input, shape index: {}]
  %s3 = inlined_call_operand.vmem [shape: f32[32,64], index: 3, kind: input, shape index: {}]
  %s4 = inlined_call_operand.vmem [shape: f32[32,1], index: 4, kind: input, shape index: {}]
  %s5 = inlined_call_operand.vmem [shape: f32[32,2], index: 5, kind: input, shape index: {}]
  %s6 = inlined_call_operand.vmem [shape: f32[16,64], index: 6, kind: input, shape index: {}]
  %s7 = inlined_call_operand.vmem [shape: f32[16,1], index: 7, kind: input, shape index: {}]
  %s8 = inlined_call_operand.vmem [shape: f32[16,32], index: 8, kind: input, shape index: {}]
  %s9 = inlined_call_operand.vmem [shape: f32[16,1], index: 9, kind: input, shape index: {}]
  %s10 = inlined_call_operand.vmem [shape: f32[16,2], index: 10, kind: input, shape index: {}]
  %s11 = inlined_call_operand.vmem [shape: f32[16,32], index: 11, kind: input, shape index: {}]
  %s12 = inlined_call_operand.vmem [shape: f32[16,1], index: 12, kind: input, shape index: {}]
  %s13 = inlined_call_operand.vmem [shape: f32[16,32], index: 13, kind: input, shape index: {}]
  %s14 = inlined_call_operand.vmem [shape: f32[16,1], index: 14, kind: input, shape index: {}]
  %s15 = inlined_call_operand.vmem [shape: f32[16,2], index: 15, kind: input, shape index: {}]
  %s16 = inlined_call_operand.vmem [shape: f32[4,16,6], index: 16, kind: output, shape index: {}]
  %s17 = sld [smem:[#allocation0]]
  $region104: #{tpu_custom_call.1} parent=0
    _
  %s19 = ssub.s32 1, %s17
  %s20 = scalar_select 0, %s19, %s17
  loop: start=0, step=1, limit=4
  $region2: #{tpu_custom_call.1} parent=0 // loop_pre_header
    _
  $region3: #{tpu_custom_call.1} parent=0 // loop_header
    %s22 = sphi 0, %s26
    %p23 = scmp.ge.s32.totalorder %s22, 4
    %s32 = sphi 0, %s34
    %s35 = sphi 0, %s32
    %s36 = sphi 0, %s35
    %s52 = sphi 0, %s36
    %s56 = sphi 0, %s56
    %s58 = sphi 0, %s56
    %s59 = sphi 0, %s58
    %s73 = sphi 0, %s59
    %s77 = sphi 0, %s77
    %s79 = sphi 0, %s77
    %s80 = sphi 0, %s79
    %s94 = sphi 0, %s80
    %s98 = sphi 0, %s98
    %s100 = sphi 0, %s98
    %s101 = sphi 0, %s100
    %s115 = sphi 0, %s101
    %s119 = sphi 0, %s119
    %s121 = sphi 0, %s119
    %s122 = sphi 0, %s121
    %s136 = sphi 0, %s122
    %s140 = sphi 0, %s140
    %s142 = sphi 0, %s140
    %s143 = sphi 0, %s142
    %s157 = sphi 0, %s143
    %s161 = sphi 0, %s161
    %s163 = sphi 0, %s161
    %s164 = sphi 0, %s163
    %s178 = sphi 0, %s164
    %s182 = sphi 0, %s182
    %s184 = sphi 0, %s182
    %s185 = sphi 0, %s184
    %s199 = sphi 0, %s185
    %s203 = sphi 0, %s203
    %s205 = sphi 0, %s203
    %s206 = sphi 0, %s205
    %s220 = sphi 0, %s206
    %s224 = sphi 0, %s224
    %s226 = sphi 0, %s224
    %s227 = sphi 0, %s226
    %s241 = sphi 0, %s227
    %s245 = sphi 0, %s245
    %s247 = sphi 0, %s245
    %s248 = sphi 0, %s247
    %s262 = sphi 0, %s248
    %s266 = sphi 0, %s266
    %s268 = sphi 0, %s266
    %s269 = sphi 0, %s268
    %s283 = sphi 0, %s269
    %s287 = sphi 0, %s287
    %s289 = sphi 0, %s287
    %s290 = sphi 0, %s289
    %s304 = sphi 0, %s290
    %s308 = sphi 0, %s308
    %s310 = sphi 0, %s308
    %s311 = sphi 0, %s310
    %s325 = sphi 0, %s311
    %s329 = sphi 0, %s329
    %s331 = sphi 0, %s329
    %s332 = sphi 0, %s331
    %s346 = sphi 0, %s332
    %s350 = sphi 0, %s350
    %s352 = sphi 0, %s350
    %s353 = sphi 0, %s352
    %s367 = sphi 0, %s353
    %s373 = sphi 0, %s375
    %s376 = sphi 0, %s373
    %s377 = sphi 0, %s376
    %s393 = sphi 0, %s377
  $region4: #{tpu_custom_call.1} parent=0 // loop_header_branch
    %25 = sbr.rel (%p23) target = $region8
  $region5: #{tpu_custom_call.1} parent=0 // loop_body
    %s27 = ssub.s32 %s22, 1
    %s28 = ssub.s32 %s22, 2
    %s29 = sadd.s32 %s22, 1
    %s30 = ssub.s32 %s22, %s29
    %p31 = scmp.eq.s32.totalorder %s30, 0
    %s33 = sadd.s32 %s32, 1
    %s34 = scalar_select %p31, %s32, %s33
    %p37 = pneg %p31
    %p38 = scmp.eq.s32.totalorder %s22, 1
    %p39 = por %p37, %p38
    %p40 = scmp.ne.s32.totalorder %s32, %s35
    %p41 = scmp.eq.s32.totalorder %s22, 0
    %p42 = por %p40, %p41
    %p43 = scmp.ne.s32.totalorder %s32, %s35
    %p44 = scmp.eq.s32.totalorder %s27, 1
    %p45 = por %p43, %p44
    %p46 = scmp.ne.s32.totalorder %s35, %s36
    %p47 = scmp.eq.s32.totalorder %s27, 0
    %p48 = por %p46, %p47
    %p49 = scmp.ne.s32.totalorder %s35, %s36
    %p50 = scmp.eq.s32.totalorder %s28, 1
    %p51 = por %p49, %p50
    %p53 = scmp.ne.s32.totalorder %s36, %s52
    %p54 = scmp.eq.s32.totalorder %s28, 0
    %p55 = por %p53, %p54
    %s57 = sadd.s32 %s56, 1
    %p60 = scmp.eq.s32.totalorder %s22, 1
    %p61 = scmp.ne.s32.totalorder %s56, %s58
    %p62 = scmp.eq.s32.totalorder %s22, 0
    %p63 = por %p61, %p62
    %p64 = scmp.ne.s32.totalorder %s56, %s58
    %p65 = scmp.eq.s32.totalorder %s27, 1
    %p66 = por %p64, %p65
    %p67 = scmp.ne.s32.totalorder %s58, %s59
    %p68 = scmp.eq.s32.totalorder %s27, 0
    %p69 = por %p67, %p68
    %p70 = scmp.ne.s32.totalorder %s58, %s59
    %p71 = scmp.eq.s32.totalorder %s28, 1
    %p72 = por %p70, %p71
    %p74 = scmp.ne.s32.totalorder %s59, %s73
    %p75 = scmp.eq.s32.totalorder %s28, 0
    %p76 = por %p74, %p75
    %s78 = sadd.s32 %s77, 1
    %p81 = scmp.eq.s32.totalorder %s22, 1
    %p82 = scmp.ne.s32.totalorder %s77, %s79
    %p83 = scmp.eq.s32.totalorder %s22, 0
    %p84 = por %p82, %p83
    %p85 = scmp.ne.s32.totalorder %s77, %s79
    %p86 = scmp.eq.s32.totalorder %s27, 1
    %p87 = por %p85, %p86
    %p88 = scmp.ne.s32.totalorder %s79, %s80
    %p89 = scmp.eq.s32.totalorder %s27, 0
    %p90 = por %p88, %p89
    %p91 = scmp.ne.s32.totalorder %s79, %s80
    %p92 = scmp.eq.s32.totalorder %s28, 1
    %p93 = por %p91, %p92
    %p95 = scmp.ne.s32.totalorder %s80, %s94
    %p96 = scmp.eq.s32.totalorder %s28, 0
    %p97 = por %p95, %p96
    %s99 = sadd.s32 %s98, 1
    %p102 = scmp.eq.s32.totalorder %s22, 1
    %p103 = scmp.ne.s32.totalorder %s98, %s100
    %p104 = scmp.eq.s32.totalorder %s22, 0
    %p105 = por %p103, %p104
    %p106 = scmp.ne.s32.totalorder %s98, %s100
    %p107 = scmp.eq.s32.totalorder %s27, 1
    %p108 = por %p106, %p107
    %p109 = scmp.ne.s32.totalorder %s100, %s101
    %p110 = scmp.eq.s32.totalorder %s27, 0
    %p111 = por %p109, %p110
    %p112 = scmp.ne.s32.totalorder %s100, %s101
    %p113 = scmp.eq.s32.totalorder %s28, 1
    %p114 = por %p112, %p113
    %p116 = scmp.ne.s32.totalorder %s101, %s115
    %p117 = scmp.eq.s32.totalorder %s28, 0
    %p118 = por %p116, %p117
    %s120 = sadd.s32 %s119, 1
    %p123 = scmp.eq.s32.totalorder %s22, 1
    %p124 = scmp.ne.s32.totalorder %s119, %s121
    %p125 = scmp.eq.s32.totalorder %s22, 0
    %p126 = por %p124, %p125
    %p127 = scmp.ne.s32.totalorder %s119, %s121
    %p128 = scmp.eq.s32.totalorder %s27, 1
    %p129 = por %p127, %p128
    %p130 = scmp.ne.s32.totalorder %s121, %s122
    %p131 = scmp.eq.s32.totalorder %s27, 0
    %p132 = por %p130, %p131
    %p133 = scmp.ne.s32.totalorder %s121, %s122
    %p134 = scmp.eq.s32.totalorder %s28, 1
    %p135 = por %p133, %p134
    %p137 = scmp.ne.s32.totalorder %s122, %s136
    %p138 = scmp.eq.s32.totalorder %s28, 0
    %p139 = por %p137, %p138
    %s141 = sadd.s32 %s140, 1
    %p144 = scmp.eq.s32.totalorder %s22, 1
    %p145 = scmp.ne.s32.totalorder %s140, %s142
    %p146 = scmp.eq.s32.totalorder %s22, 0
    %p147 = por %p145, %p146
    %p148 = scmp.ne.s32.totalorder %s140, %s142
    %p149 = scmp.eq.s32.totalorder %s27, 1
    %p150 = por %p148, %p149
    %p151 = scmp.ne.s32.totalorder %s142, %s143
    %p152 = scmp.eq.s32.totalorder %s27, 0
    %p153 = por %p151, %p152
    %p154 = scmp.ne.s32.totalorder %s142, %s143
    %p155 = scmp.eq.s32.totalorder %s28, 1
    %p156 = por %p154, %p155
    %p158 = scmp.ne.s32.totalorder %s143, %s157
    %p159 = scmp.eq.s32.totalorder %s28, 0
    %p160 = por %p158, %p159
    %s162 = sadd.s32 %s161, 1
    %p165 = scmp.eq.s32.totalorder %s22, 1
    %p166 = scmp.ne.s32.totalorder %s161, %s163
    %p167 = scmp.eq.s32.totalorder %s22, 0
    %p168 = por %p166, %p167
    %p169 = scmp.ne.s32.totalorder %s161, %s163
    %p170 = scmp.eq.s32.totalorder %s27, 1
    %p171 = por %p169, %p170
    %p172 = scmp.ne.s32.totalorder %s163, %s164
    %p173 = scmp.eq.s32.totalorder %s27, 0
    %p174 = por %p172, %p173
    %p175 = scmp.ne.s32.totalorder %s163, %s164
    %p176 = scmp.eq.s32.totalorder %s28, 1
    %p177 = por %p175, %p176
    %p179 = scmp.ne.s32.totalorder %s164, %s178
    %p180 = scmp.eq.s32.totalorder %s28, 0
    %p181 = por %p179, %p180
    %s183 = sadd.s32 %s182, 1
    %p186 = scmp.eq.s32.totalorder %s22, 1
    %p187 = scmp.ne.s32.totalorder %s182, %s184
    %p188 = scmp.eq.s32.totalorder %s22, 0
    %p189 = por %p187, %p188
    %p190 = scmp.ne.s32.totalorder %s182, %s184
    %p191 = scmp.eq.s32.totalorder %s27, 1
    %p192 = por %p190, %p191
    %p193 = scmp.ne.s32.totalorder %s184, %s185
    %p194 = scmp.eq.s32.totalorder %s27, 0
    %p195 = por %p193, %p194
    %p196 = scmp.ne.s32.totalorder %s184, %s185
    %p197 = scmp.eq.s32.totalorder %s28, 1
    %p198 = por %p196, %p197
    %p200 = scmp.ne.s32.totalorder %s185, %s199
    %p201 = scmp.eq.s32.totalorder %s28, 0
    %p202 = por %p200, %p201
    %s204 = sadd.s32 %s203, 1
    %p207 = scmp.eq.s32.totalorder %s22, 1
    %p208 = scmp.ne.s32.totalorder %s203, %s205
    %p209 = scmp.eq.s32.totalorder %s22, 0
    %p210 = por %p208, %p209
    %p211 = scmp.ne.s32.totalorder %s203, %s205
    %p212 = scmp.eq.s32.totalorder %s27, 1
    %p213 = por %p211, %p212
    %p214 = scmp.ne.s32.totalorder %s205, %s206
    %p215 = scmp.eq.s32.totalorder %s27, 0
    %p216 = por %p214, %p215
    %p217 = scmp.ne.s32.totalorder %s205, %s206
    %p218 = scmp.eq.s32.totalorder %s28, 1
    %p219 = por %p217, %p218
    %p221 = scmp.ne.s32.totalorder %s206, %s220
    %p222 = scmp.eq.s32.totalorder %s28, 0
    %p223 = por %p221, %p222
    %s225 = sadd.s32 %s224, 1
    %p228 = scmp.eq.s32.totalorder %s22, 1
    %p229 = scmp.ne.s32.totalorder %s224, %s226
    %p230 = scmp.eq.s32.totalorder %s22, 0
    %p231 = por %p229, %p230
    %p232 = scmp.ne.s32.totalorder %s224, %s226
    %p233 = scmp.eq.s32.totalorder %s27, 1
    %p234 = por %p232, %p233
    %p235 = scmp.ne.s32.totalorder %s226, %s227
    %p236 = scmp.eq.s32.totalorder %s27, 0
    %p237 = por %p235, %p236
    %p238 = scmp.ne.s32.totalorder %s226, %s227
    %p239 = scmp.eq.s32.totalorder %s28, 1
    %p240 = por %p238, %p239
    %p242 = scmp.ne.s32.totalorder %s227, %s241
    %p243 = scmp.eq.s32.totalorder %s28, 0
    %p244 = por %p242, %p243
    %s246 = sadd.s32 %s245, 1
    %p249 = scmp.eq.s32.totalorder %s22, 1
    %p250 = scmp.ne.s32.totalorder %s245, %s247
    %p251 = scmp.eq.s32.totalorder %s22, 0
    %p252 = por %p250, %p251
    %p253 = scmp.ne.s32.totalorder %s245, %s247
    %p254 = scmp.eq.s32.totalorder %s27, 1
    %p255 = por %p253, %p254
    %p256 = scmp.ne.s32.totalorder %s247, %s248
    %p257 = scmp.eq.s32.totalorder %s27, 0
    %p258 = por %p256, %p257
    %p259 = scmp.ne.s32.totalorder %s247, %s248
    %p260 = scmp.eq.s32.totalorder %s28, 1
    %p261 = por %p259, %p260
    %p263 = scmp.ne.s32.totalorder %s248, %s262
    %p264 = scmp.eq.s32.totalorder %s28, 0
    %p265 = por %p263, %p264
    %s267 = sadd.s32 %s266, 1
    %p270 = scmp.eq.s32.totalorder %s22, 1
    %p271 = scmp.ne.s32.totalorder %s266, %s268
    %p272 = scmp.eq.s32.totalorder %s22, 0
    %p273 = por %p271, %p272
    %p274 = scmp.ne.s32.totalorder %s266, %s268
    %p275 = scmp.eq.s32.totalorder %s27, 1
    %p276 = por %p274, %p275
    %p277 = scmp.ne.s32.totalorder %s268, %s269
    %p278 = scmp.eq.s32.totalorder %s27, 0
    %p279 = por %p277, %p278
    %p280 = scmp.ne.s32.totalorder %s268, %s269
    %p281 = scmp.eq.s32.totalorder %s28, 1
    %p282 = por %p280, %p281
    %p284 = scmp.ne.s32.totalorder %s269, %s283
    %p285 = scmp.eq.s32.totalorder %s28, 0
    %p286 = por %p284, %p285
    %s288 = sadd.s32 %s287, 1
    %p291 = scmp.eq.s32.totalorder %s22, 1
    %p292 = scmp.ne.s32.totalorder %s287, %s289
    %p293 = scmp.eq.s32.totalorder %s22, 0
    %p294 = por %p292, %p293
    %p295 = scmp.ne.s32.totalorder %s287, %s289
    %p296 = scmp.eq.s32.totalorder %s27, 1
    %p297 = por %p295, %p296
    %p298 = scmp.ne.s32.totalorder %s289, %s290
    %p299 = scmp.eq.s32.totalorder %s27, 0
    %p300 = por %p298, %p299
    %p301 = scmp.ne.s32.totalorder %s289, %s290
    %p302 = scmp.eq.s32.totalorder %s28, 1
    %p303 = por %p301, %p302
    %p305 = scmp.ne.s32.totalorder %s290, %s304
    %p306 = scmp.eq.s32.totalorder %s28, 0
    %p307 = por %p305, %p306
    %s309 = sadd.s32 %s308, 1
    %p312 = scmp.eq.s32.totalorder %s22, 1
    %p313 = scmp.ne.s32.totalorder %s308, %s310
    %p314 = scmp.eq.s32.totalorder %s22, 0
    %p315 = por %p313, %p314
    %p316 = scmp.ne.s32.totalorder %s308, %s310
    %p317 = scmp.eq.s32.totalorder %s27, 1
    %p318 = por %p316, %p317
    %p319 = scmp.ne.s32.totalorder %s310, %s311
    %p320 = scmp.eq.s32.totalorder %s27, 0
    %p321 = por %p319, %p320
    %p322 = scmp.ne.s32.totalorder %s310, %s311
    %p323 = scmp.eq.s32.totalorder %s28, 1
    %p324 = por %p322, %p323
    %p326 = scmp.ne.s32.totalorder %s311, %s325
    %p327 = scmp.eq.s32.totalorder %s28, 0
    %p328 = por %p326, %p327
    %s330 = sadd.s32 %s329, 1
    %p333 = scmp.eq.s32.totalorder %s22, 1
    %p334 = scmp.ne.s32.totalorder %s329, %s331
    %p335 = scmp.eq.s32.totalorder %s22, 0
    %p336 = por %p334, %p335
    %p337 = scmp.ne.s32.totalorder %s329, %s331
    %p338 = scmp.eq.s32.totalorder %s27, 1
    %p339 = por %p337, %p338
    %p340 = scmp.ne.s32.totalorder %s331, %s332
    %p341 = scmp.eq.s32.totalorder %s27, 0
    %p342 = por %p340, %p341
    %p343 = scmp.ne.s32.totalorder %s331, %s332
    %p344 = scmp.eq.s32.totalorder %s28, 1
    %p345 = por %p343, %p344
    %p347 = scmp.ne.s32.totalorder %s332, %s346
    %p348 = scmp.eq.s32.totalorder %s28, 0
    %p349 = por %p347, %p348
    %s351 = sadd.s32 %s350, 1
    %p354 = scmp.eq.s32.totalorder %s22, 1
    %p355 = scmp.ne.s32.totalorder %s350, %s352
    %p356 = scmp.eq.s32.totalorder %s22, 0
    %p357 = por %p355, %p356
    %p358 = scmp.ne.s32.totalorder %s350, %s352
    %p359 = scmp.eq.s32.totalorder %s27, 1
    %p360 = por %p358, %p359
    %p361 = scmp.ne.s32.totalorder %s352, %s353
    %p362 = scmp.eq.s32.totalorder %s27, 0
    %p363 = por %p361, %p362
    %p364 = scmp.ne.s32.totalorder %s352, %s353
    %p365 = scmp.eq.s32.totalorder %s28, 1
    %p366 = por %p364, %p365
    %p368 = scmp.ne.s32.totalorder %s353, %s367
    %p369 = scmp.eq.s32.totalorder %s28, 0
    %p370 = por %p368, %p369
    %s371 = ssub.s32 %s22, %s29
    %p372 = scmp.eq.s32.totalorder %s371, 0
    %s374 = sadd.s32 %s373, 1
    %s375 = scalar_select %p372, %s373, %s374
    %p378 = pneg %p372
    %p379 = scmp.eq.s32.totalorder %s22, 1
    %p380 = por %p378, %p379
    %p381 = scmp.ne.s32.totalorder %s373, %s376
    %p382 = scmp.eq.s32.totalorder %s22, 0
    %p383 = por %p381, %p382
    %p384 = scmp.ne.s32.totalorder %s373, %s376
    %p385 = scmp.eq.s32.totalorder %s27, 1
    %p386 = por %p384, %p385
    %p387 = scmp.ne.s32.totalorder %s376, %s377
    %p388 = scmp.eq.s32.totalorder %s27, 0
    %p389 = por %p387, %p388
    %p390 = scmp.ne.s32.totalorder %s376, %s377
    %p391 = scmp.eq.s32.totalorder %s28, 1
    %p392 = por %p390, %p391
    %p394 = scmp.ne.s32.totalorder %s377, %s393
    %p395 = scmp.eq.s32.totalorder %s28, 0
    %p396 = por %p394, %p395
    %p397 = scmp.le.s32.totalorder 1, %s22
    %p398 = scmp.lt.s32.totalorder %s22, 3
    %p399 = pnand %p397, %p398
    %p400 = pneg %p399
    // Predicated region
    $region9: #{tpu_custom_call.1} parent=5 // pred_check
      _
    $region10: #{tpu_custom_call.1} parent=5 // pred_check_branch
      %402 = sbr.rel (%p399) target = $region12
    $region11: #{tpu_custom_call.1} parent=5 // pred_region
      %s403 = ssub.s32 %s22, 1
      // Predicated region
      $region13: #{tpu_custom_call.1} parent=11 // pred_check
        %p404 = pneg %p69
      $region14: #{tpu_custom_call.1} parent=11 // pred_check_branch
        %406 = sbr.rel (%p404) target = $region16
      $region15: #{tpu_custom_call.1} parent=11 // pred_region
        _
      $region16: #{tpu_custom_call.1} parent=11 // pred_fallthru
        _
      // Predicated region
      $region17: #{tpu_custom_call.1} parent=11 // pred_check
        %p407 = pneg %p90
      $region18: #{tpu_custom_call.1} parent=11 // pred_check_branch
        %409 = sbr.rel (%p407) target = $region20
      $region19: #{tpu_custom_call.1} parent=11 // pred_region
        _
      $region20: #{tpu_custom_call.1} parent=11 // pred_fallthru
        _
      // Predicated region
      $region21: #{tpu_custom_call.1} parent=11 // pred_check
        %p410 = pneg %p111
      $region22: #{tpu_custom_call.1} parent=11 // pred_check_branch
        %412 = sbr.rel (%p410) target = $region24
      $region23: #{tpu_custom_call.1} parent=11 // pred_region
        _
      $region24: #{tpu_custom_call.1} parent=11 // pred_fallthru
        _
      // Predicated region
      $region25: #{tpu_custom_call.1} parent=11 // pred_check
        %p413 = pneg %p132
      $region26: #{tpu_custom_call.1} parent=11 // pred_check_branch
        %415 = sbr.rel (%p413) target = $region28
      $region27: #{tpu_custom_call.1} parent=11 // pred_region
        _
      $region28: #{tpu_custom_call.1} parent=11 // pred_fallthru
        _
      // Predicated region
      $region29: #{tpu_custom_call.1} parent=11 // pred_check
        %p416 = pneg %p153
      $region30: #{tpu_custom_call.1} parent=11 // pred_check_branch
        %418 = sbr.rel (%p416) target = $region32
      $region31: #{tpu_custom_call.1} parent=11 // pred_region
        _
      $region32: #{tpu_custom_call.1} parent=11 // pred_fallthru
        _
      // Predicated region
      $region33: #{tpu_custom_call.1} parent=11 // pred_check
        %p419 = pneg %p174
      $region34: #{tpu_custom_call.1} parent=11 // pred_check_branch
        %421 = sbr.rel (%p419) target = $region36
      $region35: #{tpu_custom_call.1} parent=11 // pred_region
        _
      $region36: #{tpu_custom_call.1} parent=11 // pred_fallthru
        _
      // Predicated region
      $region37: #{tpu_custom_call.1} parent=11 // pred_check
        %p422 = pneg %p195
      $region38: #{tpu_custom_call.1} parent=11 // pred_check_branch
        %424 = sbr.rel (%p422) target = $region40
      $region39: #{tpu_custom_call.1} parent=11 // pred_region
        _
      $region40: #{tpu_custom_call.1} parent=11 // pred_fallthru
        _
      // Predicated region
      $region41: #{tpu_custom_call.1} parent=11 // pred_check
        %p425 = pneg %p216
      $region42: #{tpu_custom_call.1} parent=11 // pred_check_branch
        %427 = sbr.rel (%p425) target = $region44
      $region43: #{tpu_custom_call.1} parent=11 // pred_region
        _
      $region44: #{tpu_custom_call.1} parent=11 // pred_fallthru
        _
      // Predicated region
      $region45: #{tpu_custom_call.1} parent=11 // pred_check
        %p428 = pneg %p237
      $region46: #{tpu_custom_call.1} parent=11 // pred_check_branch
        %430 = sbr.rel (%p428) target = $region48
      $region47: #{tpu_custom_call.1} parent=11 // pred_region
        _
      $region48: #{tpu_custom_call.1} parent=11 // pred_fallthru
        _
      // Predicated region
      $region49: #{tpu_custom_call.1} parent=11 // pred_check
        %p431 = pneg %p258
      $region50: #{tpu_custom_call.1} parent=11 // pred_check_branch
        %433 = sbr.rel (%p431) target = $region52
      $region51: #{tpu_custom_call.1} parent=11 // pred_region
        _
      $region52: #{tpu_custom_call.1} parent=11 // pred_fallthru
        _
      // Predicated region
      $region53: #{tpu_custom_call.1} parent=11 // pred_check
        %p434 = pneg %p279
      $region54: #{tpu_custom_call.1} parent=11 // pred_check_branch
        %436 = sbr.rel (%p434) target = $region56
      $region55: #{tpu_custom_call.1} parent=11 // pred_region
        _
      $region56: #{tpu_custom_call.1} parent=11 // pred_fallthru
        _
      // Predicated region
      $region57: #{tpu_custom_call.1} parent=11 // pred_check
        %p437 = pneg %p300
      $region58: #{tpu_custom_call.1} parent=11 // pred_check_branch
        %439 = sbr.rel (%p437) target = $region60
      $region59: #{tpu_custom_call.1} parent=11 // pred_region
        _
      $region60: #{tpu_custom_call.1} parent=11 // pred_fallthru
        _
      // Predicated region
      $region61: #{tpu_custom_call.1} parent=11 // pred_check
        %p440 = pneg %p321
      $region62: #{tpu_custom_call.1} parent=11 // pred_check_branch
        %442 = sbr.rel (%p440) target = $region64
      $region63: #{tpu_custom_call.1} parent=11 // pred_region
        _
      $region64: #{tpu_custom_call.1} parent=11 // pred_fallthru
        _
      // Predicated region
      $region65: #{tpu_custom_call.1} parent=11 // pred_check
        %p443 = pneg %p342
      $region66: #{tpu_custom_call.1} parent=11 // pred_check_branch
        %445 = sbr.rel (%p443) target = $region68
      $region67: #{tpu_custom_call.1} parent=11 // pred_region
        _
      $region68: #{tpu_custom_call.1} parent=11 // pred_fallthru
        _
      // Predicated region
      $region69: #{tpu_custom_call.1} parent=11 // pred_check
        %p446 = pneg %p363
      $region70: #{tpu_custom_call.1} parent=11 // pred_check_branch
        %448 = sbr.rel (%p446) target = $region72
      $region71: #{tpu_custom_call.1} parent=11 // pred_region
        _
      $region72: #{tpu_custom_call.1} parent=11 // pred_fallthru
        _
    $region12: #{tpu_custom_call.1} parent=5 // pred_fallthru
      _
    %p449 = scmp.lt.s32.totalorder %s22, 2
    // Predicated region
    $region73: #{tpu_custom_call.1} parent=5 // pred_check
      %p450 = pneg %p449
    $region74: #{tpu_custom_call.1} parent=5 // pred_check_branch
      %452 = sbr.rel (%p450) target = $region76
    $region75: #{tpu_custom_call.1} parent=5 // pred_region
      // Predicated region
      $region77: #{tpu_custom_call.1} parent=75 // pred_check
        %p453 = pneg %p42
      $region78: #{tpu_custom_call.1} parent=75 // pred_check_branch
        %455 = sbr.rel (%p453) target = $region80
      $region79: #{tpu_custom_call.1} parent=75 // pred_region
        %s456 = smul.u32 2, %s22
        %p457 = scmp.lt.s32.totalorder %s456, 3
        %s458 = scalar_select %p457, %s456, 3
        %s459 = smul.addr %s458, 4
        %s460 = scalar_lea.vmem %s0, %s459
        %s461 = smul.u32 2, %s22
      $region80: #{tpu_custom_call.1} parent=75 // pred_fallthru
        _
    $region76: #{tpu_custom_call.1} parent=5 // pred_fallthru
      _
    %p462 = scmp.le.s32.totalorder 1, %s22
    %p463 = scmp.lt.s32.totalorder %s22, 3
    %p464 = pnand %p462, %p463
    %p465 = pneg %p464
    // Predicated region
    $region81: #{tpu_custom_call.1} parent=5 // pred_check
      _
    $region82: #{tpu_custom_call.1} parent=5 // pred_check_branch
      %467 = sbr.rel (%p464) target = $region84
    $region83: #{tpu_custom_call.1} parent=5 // pred_region
      %s468 = ssub.s32 %s22, 1
      %s469 = smul.u32 2, %s27
      %p470 = scmp.lt.s32.totalorder %s469, 3
      %s471 = scalar_select %p470, %s469, 3
      %s472 = smul.addr %s471, 4
      %s473 = scalar_lea.vmem %s0, %s472
      %p474 = pneg %p48
      %p475 = pneg %p45
      %p476 = pneg %p69
      %p477 = pneg %p66
      %p478 = pneg %p90
      %p479 = pneg %p87
      %p480 = pneg %p111
      %p481 = pneg %p108
      %p482 = pneg %p132
      %p483 = pneg %p129
      %p484 = pneg %p153
      %p485 = pneg %p150
      %p486 = pneg %p174
      %p487 = pneg %p171
      %p488 = pneg %p195
      %p489 = pneg %p192
      %p490 = pneg %p216
      %p491 = pneg %p213
      %p492 = pneg %p237
      %p493 = pneg %p234
      %p494 = pneg %p258
      %p495 = pneg %p255
      %p496 = pneg %p279
      %p497 = pneg %p276
      %p498 = pneg %p300
      %p499 = pneg %p297
      %p500 = pneg %p321
      %p501 = pneg %p318
      %p502 = pneg %p342
      %p503 = pneg %p339
      %p504 = pneg %p363
      %p505 = pneg %p360
      %p506 = pneg %p389
      %p507 = pneg %p386
      %s508 = smul.u32 2, %s27
      %p509 = scmp.lt.s32.totalorder %s508, 3
      %s510 = scalar_select %p509, %s508, 3
      %s511 = smul.addr %s510, 2
      %s512 = smul.addr %s511, 8
      %s513 = scalar_lea.vmem %s16, %s512
      %s514 = smul.u32 2, %s27
      %p515 = scmp.lt.s32.totalorder %s514, 3
      %s516 = scalar_select %p515, %s514, 3
      %s517 = smul.addr %s516, 4
      %s518 = scalar_lea.vmem %s0, %s517
      %s519 = smul.u32 2, %s27
      %s520 = smul.u32 2, %s27
      %p521 = scmp.lt.s32.totalorder %s520, 3
      %s522 = scalar_select %p521, %s520, 3
      %s523 = smul.addr %s522, 2
      %s524 = smul.addr %s523, 8
      %s525 = scalar_lea.vmem %s16, %s524
      %s526 = smul.u32 2, %s27
      %v527 = vld [vmem:[%s1] sm:$0xff]
      %v528 = vld [vmem:[%s1 + $0x8] sm:$0xff]
      %v529 = vld [vmem:[%s1 + $0x10] sm:$0xff]
      %v530 = vld [vmem:[%s1 + $0x18] sm:$0xff]
      %v531 = vld [vmem:[%s2] sm:$0xff]
      %v532 = vld [vmem:[%s2 + $0x8] sm:$0xff]
      %v533 = vld [vmem:[%s2 + $0x10] sm:$0xff]
      %v534 = vld [vmem:[%s2 + $0x18] sm:$0xff]
      %v535 = vld [vmem:[%s3] sm:$0xff]
      %v536 = vld [vmem:[%s3 + $0x8] sm:$0xff]
      %v537 = vld [vmem:[%s3 + $0x10] sm:$0xff]
      %v538 = vld [vmem:[%s3 + $0x18] sm:$0xff]
      %v539 = vld [vmem:[%s4] sm:$0xff]
      %v540 = vld [vmem:[%s4 + $0x8] sm:$0xff]
      %v541 = vld [vmem:[%s4 + $0x10] sm:$0xff]
      %v542 = vld [vmem:[%s4 + $0x18] sm:$0xff]
      %v543 = vld [vmem:[%s6] sm:$0xff]
      %v544 = vld [vmem:[%s6 + $0x8] sm:$0xff]
      %v545 = vld [vmem:[%s7] sm:$0xff]
      %v546 = vld [vmem:[%s7 + $0x8] sm:$0xff]
      %v547 = vld [vmem:[%s8] sm:$0xff]
      %v548 = vld [vmem:[%s8 + $0x8] sm:$0xff]
      %v549 = vld [vmem:[%s9] sm:$0xff]
      %v550 = vld [vmem:[%s9 + $0x8] sm:$0xff]
      %v551 = vld [vmem:[%s11] sm:$0xff]
      %v552 = vld [vmem:[%s11 + $0x8] sm:$0xff]
      %v553 = vld [vmem:[%s12] sm:$0xff]
      %v554 = vld [vmem:[%s12 + $0x8] sm:$0xff]
      %v555 = vld [vmem:[%s13] sm:$0xff]
      %v556 = vld [vmem:[%s13 + $0x8] sm:$0xff]
      %v557 = vld [vmem:[%s14] sm:$0xff]
      %v558 = vld [vmem:[%s14 + $0x8] sm:$0xff]
      %v559 = vld [vmem:[%s5] sm:$0xff]
      %v560 = vld [vmem:[%s5 + $0x8] sm:$0xff]
      %v561 = vld [vmem:[%s5 + $0x10] sm:$0xff]
      %v562 = vld [vmem:[%s5 + $0x18] sm:$0xff]
      %v563 = vld [vmem:[%s10] sm:$0xff]
      %v564 = vld [vmem:[%s10 + $0x8] sm:$0xff]
      %v565 = vld [vmem:[%s15] sm:$0xff]
      %v566 = vld [vmem:[%s15 + $0x8] sm:$0xff]
      loop: start=0, step=1, limit=2
      $region85: #{tpu_custom_call.1} parent=83 // loop_pre_header
        _
      $region86: #{tpu_custom_call.1} parent=83 // loop_header
        %s568 = sphi 0, %s572
        %p569 = scmp.ge.s32.totalorder %s568, 2
      $region87: #{tpu_custom_call.1} parent=83 // loop_header_branch
        %571 = sbr.rel (%p569) target = $region91
      $region88: #{tpu_custom_call.1} parent=83 // loop_body
        %s573 = smul.u32 %s568, 4
        %s574 = scalar_lea.vmem %s518, %s573
        %v575 = vld [vmem:[%s574] sm:$0xf]
        %580 = vrot.lane.b32.xlu0 %v527, 124
        %v581 = vpop.permute.xlu0 %580
        %582 = vrot.lane.b32.xlu0 %v528, 124
        %v583 = vpop.permute.xlu0 %582
        %584 = vrot.lane.b32.xlu0 %v529, 124
        %v585 = vpop.permute.xlu0 %584
        %586 = vrot.lane.b32.xlu0 %v530, 124
        %v587 = vpop.permute.xlu0 %586
        %589 = vrot.lane.b32.xlu0 %v575, 127
        %v590 = vpop.permute.xlu0 %589
        %vm591 = vcmask 31744
        %v592 = vsel %vm591, %v581, 0
        %v594 = vsel %vm591, %v583, 0
        %v596 = vsel %vm591, %v585, 0
        %v598 = vsel %vm591, %v587, 0
        %vm600 = vcmask 1043456
        %v601 = vsel %vm600, %v590, 0
        %603 = vmatprep.subr.mxu0 0.0
        %604 = vmatpush1.msra.mxu0 %v601
        %605 = vmatprep.subr.mxu0 0.0
        %606 = vmatpush1.msra.mxu0 0.0
        %607 = vmatprep.subr.mxu0 0.0
        %608 = vmatpush1.msra.mxu0 0.0
        %609 = vmatprep.subr.mxu0 0.0
        %610 = vmatpush1.msra.mxu0 0.0
        %611 = vmatprep.subr.mxu0 0.0
        %612 = vmatpush1.msra.mxu0 0.0
        %613 = vmatprep.subr.mxu0 0.0
        %614 = vmatpush1.msra.mxu0 0.0
        %615 = vmatprep.subr.mxu0 0.0
        %616 = vmatpush1.msra.mxu0 0.0
        %617 = vmatprep.subr.mxu0 0.0
        %618 = vmatpush1.msra.mxu0 0.0
        %619 = vmatprep.subr.mxu0 0.0
        %620 = vmatpush1.msra.mxu0 0.0
        %621 = vmatprep.subr.mxu0 0.0
        %622 = vmatpush1.msra.mxu0 0.0
        %623 = vmatprep.subr.mxu0 0.0
        %624 = vmatpush1.msra.mxu0 0.0
        %625 = vmatprep.subr.mxu0 0.0
        %626 = vmatpush1.msra.mxu0 0.0
        %627 = vmatprep.subr.mxu0 0.0
        %628 = vmatpush1.msra.mxu0 0.0
        %629 = vmatprep.subr.mxu0 0.0
        %630 = vmatpush1.msra.mxu0 0.0
        %631 = vmatprep.subr.mxu0 0.0
        %632 = vmatpush1.msra.mxu0 0.0
        %633 = vmatprep.subr.mxu0 0.0
        %634 = vmatpush1.msra.mxu0 0.0
        %635 = vmatprep.subr.mxu0 0.0
        %636 = vmatpush1.msra.mxu0 0.0
        %637 = vmatprep.subr.mxu0 0.0
        %638 = vmatpush1.msra.mxu0 0.0
        %639 = vmatprep.subr.mxu0 0.0
        %640 = vmatpush1.msra.mxu0 0.0
        %641 = vmatprep.subr.mxu0 0.0
        %642 = vmatpush1.msra.mxu0 0.0
        %643 = vmatprep.subr.mxu0 0.0
        %644 = vmatpush1.msra.mxu0 0.0
        %645 = vmatprep.subr.mxu0 0.0
        %646 = vmatpush1.msra.mxu0 0.0
        %647 = vmatprep.subr.mxu0 0.0
        %648 = vmatpush1.msra.mxu0 0.0
        %649 = vmatprep.subr.mxu0 0.0
        %650 = vmatpush1.msra.mxu0 0.0
        %651 = vmatprep.subr.mxu0 0.0
        %652 = vmatpush1.msra.mxu0 0.0
        %653 = vmatprep.subr.mxu0 0.0
        %654 = vmatpush1.msra.mxu0 0.0
        %655 = vmatprep.subr.mxu0 0.0
        %656 = vmatpush1.msra.mxu0 0.0
        %657 = vmatprep.subr.mxu0 0.0
        %658 = vmatpush1.msra.mxu0 0.0
        %659 = vmatprep.subr.mxu0 0.0
        %660 = vmatpush1.msra.mxu0 0.0
        %661 = vmatprep.subr.mxu0 0.0
        %662 = vmatpush1.msra.mxu0 0.0
        %663 = vmatprep.subr.mxu0 0.0
        %664 = vmatpush1.msra.mxu0 0.0
        %665 = vmatprep.subr.mxu0 0.0
        %666 = vmatpush1.msra.mxu0 0.0
        %667 = vmatprep.mubr.f32.mxu0 0.0
        %668 = vmatmul.mubr.f32.gmra.mrb[0].mxu0 %v592
        %v669 = vpop.f32.mrb[0].mxu0
        %v670 = vadd.f32 0.0, %v669
        %v671 = vpop.f32.mrb[0].mxu0
        %672 = vmatprep.mubr.f32.mxu0 0.0
        %673 = vmatmul.mubr.f32.gmra.mrb[0].mxu0 %v594
        %v674 = vpop.f32.mrb[0].mxu0
        %v675 = vadd.f32 0.0, %v674
        %v676 = vpop.f32.mrb[0].mxu0
        %677 = vmatprep.mubr.f32.mxu0 0.0
        %678 = vmatmul.mubr.f32.gmra.mrb[0].mxu0 %v596
        %v679 = vpop.f32.mrb[0].mxu0
        %v680 = vadd.f32 0.0, %v679
        %v681 = vpop.f32.mrb[0].mxu0
        %682 = vmatprep.mubr.f32.mxu0 0.0
        %683 = vmatmul.mubr.f32.gmra.mrb[0].mxu0 %v598
        %v684 = vpop.f32.mrb[0].mxu0
        %v685 = vadd.f32 0.0, %v684
        %v686 = vpop.f32.mrb[0].mxu0
        %687 = vdwg.mxu0
        %v688 = vsel %vm591, %v527, 0
        %v690 = vsel %vm591, %v528, 0
        %v692 = vsel %vm591, %v529, 0
        %v694 = vsel %vm591, %v530, 0
        %v696 = vsel %vm600, %v575, 0
        %698 = vmatprep.subr.mxu0 0.0
        %699 = vmatpush1.msra.mxu0 %v696
        %700 = vmatprep.subr.mxu0 0.0
        %701 = vmatpush1.msra.mxu0 0.0
        %702 = vmatprep.subr.mxu0 0.0
        %703 = vmatpush1.msra.mxu0 0.0
        %704 = vmatprep.subr.mxu0 0.0
        %705 = vmatpush1.msra.mxu0 0.0
        %706 = vmatprep.subr.mxu0 0.0
        %707 = vmatpush1.msra.mxu0 0.0
        %708 = vmatprep.subr.mxu0 0.0
        %709 = vmatpush1.msra.mxu0 0.0
        %710 = vmatprep.subr.mxu0 0.0
        %711 = vmatpush1.msra.mxu0 0.0
        %712 = vmatprep.subr.mxu0 0.0
        %713 = vmatpush1.msra.mxu0 0.0
        %714 = vmatprep.subr.mxu0 0.0
        %715 = vmatpush1.msra.mxu0 0.0
        %716 = vmatprep.subr.mxu0 0.0
        %717 = vmatpush1.msra.mxu0 0.0
        %718 = vmatprep.subr.mxu0 0.0
        %719 = vmatpush1.msra.mxu0 0.0
        %720 = vmatprep.subr.mxu0 0.0
        %721 = vmatpush1.msra.mxu0 0.0
        %722 = vmatprep.subr.mxu0 0.0
        %723 = vmatpush1.msra.mxu0 0.0
        %724 = vmatprep.subr.mxu0 0.0
        %725 = vmatpush1.msra.mxu0 0.0
        %726 = vmatprep.subr.mxu0 0.0
        %727 = vmatpush1.msra.mxu0 0.0
        %728 = vmatprep.subr.mxu0 0.0
        %729 = vmatpush1.msra.mxu0 0.0
        %730 = vmatprep.subr.mxu0 0.0
        %731 = vmatpush1.msra.mxu0 0.0
        %732 = vmatprep.subr.mxu0 0.0
        %733 = vmatpush1.msra.mxu0 0.0
        %734 = vmatprep.subr.mxu0 0.0
        %735 = vmatpush1.msra.mxu0 0.0
        %736 = vmatprep.subr.mxu0 0.0
        %737 = vmatpush1.msra.mxu0 0.0
        %738 = vmatprep.subr.mxu0 0.0
        %739 = vmatpush1.msra.mxu0 0.0
        %740 = vmatprep.subr.mxu0 0.0
        %741 = vmatpush1.msra.mxu0 0.0
        %742 = vmatprep.subr.mxu0 0.0
        %743 = vmatpush1.msra.mxu0 0.0
        %744 = vmatprep.subr.mxu0 0.0
        %745 = vmatpush1.msra.mxu0 0.0
        %746 = vmatprep.subr.mxu0 0.0
        %747 = vmatpush1.msra.mxu0 0.0
        %748 = vmatprep.subr.mxu0 0.0
        %749 = vmatpush1.msra.mxu0 0.0
        %750 = vmatprep.subr.mxu0 0.0
        %751 = vmatpush1.msra.mxu0 0.0
        %752 = vmatprep.subr.mxu0 0.0
        %753 = vmatpush1.msra.mxu0 0.0
        %754 = vmatprep.subr.mxu0 0.0
        %755 = vmatpush1.msra.mxu0 0.0
        %756 = vmatprep.subr.mxu0 0.0
        %757 = vmatpush1.msra.mxu0 0.0
        %758 = vmatprep.subr.mxu0 0.0
        %759 = vmatpush1.msra.mxu0 0.0
        %760 = vmatprep.subr.mxu0 0.0
        %761 = vmatpush1.msra.mxu0 0.0
        %762 = vmatprep.mubr.f32.mxu0 0.0
        %763 = vmatmul.mubr.f32.gmra.mrb[0].mxu0 %v688
        %v764 = vpop.f32.mrb[0].mxu0
        %v765 = vadd.f32 %v670, %v764
        %v766 = vpop.f32.mrb[0].mxu0
        %767 = vmatprep.mubr.f32.mxu0 0.0
        %768 = vmatmul.mubr.f32.gmra.mrb[0].mxu0 %v690
        %v769 = vpop.f32.mrb[0].mxu0
        %v770 = vadd.f32 %v675, %v769
        %v771 = vpop.f32.mrb[0].mxu0
        %772 = vmatprep.mubr.f32.mxu0 0.0
        %773 = vmatmul.mubr.f32.gmra.mrb[0].mxu0 %v692
        %v774 = vpop.f32.mrb[0].mxu0
        %v775 = vadd.f32 %v680, %v774
        %v776 = vpop.f32.mrb[0].mxu0
        %777 = vmatprep.mubr.f32.mxu0 0.0
        %778 = vmatmul.mubr.f32.gmra.mrb[0].mxu0 %v694
        %v779 = vpop.f32.mrb[0].mxu0
        %v780 = vadd.f32 %v685, %v779
        %v781 = vpop.f32.mrb[0].mxu0
        %782 = vdwg.mxu0
        %784 = vset.pattern.permute.xlu0 0
        %785 = vperm.xlu0 %784, %v531
        %v786 = vpop.permute.xlu0 %785
        %789 = vset.pattern.permute.xlu0 0
        %790 = vperm.xlu0 %789, %v532
        %v791 = vpop.permute.xlu0 %790
        %794 = vset.pattern.permute.xlu0 0
        %795 = vperm.xlu0 %794, %v533
        %v796 = vpop.permute.xlu0 %795
        %799 = vset.pattern.permute.xlu0 0
        %800 = vperm.xlu0 %799, %v534
        %v801 = vpop.permute.xlu0 %800
        %v803 = vadd.f32 %v765, %v786
        %v804 = vadd.f32 %v770, %v791
        %v805 = vadd.f32 %v775, %v796
        %v806 = vadd.f32 %v780, %v801
        %vm807 = vcmp.gt.f32.partialorder %v803, 0.0
        %vm808 = vcmp.gt.f32.partialorder %v804, 0.0
        %vm809 = vcmp.gt.f32.partialorder %v805, 0.0
        %vm810 = vcmp.gt.f32.partialorder %v806, 0.0
        %v811 = vmin.f32 %v803, 0.0
        %v812 = vmin.f32 %v804, 0.0
        %v813 = vmin.f32 %v805, 0.0
        %v814 = vmin.f32 %v806, 0.0
        %v815 = vmul.f32 %v811, 1.442695
        %v816 = vpow.pop %v815
        %v817 = vmul.f32 %v812, 1.442695
        %v818 = vpow.pop %v817
        %v819 = vmul.f32 %v813, 1.442695
        %v820 = vpow.pop %v819
        %v821 = vmul.f32 %v814, 1.442695
        %v822 = vpow.pop %v821
        %v823 = vsub.f32 %v816, 1.0
        %v824 = vsub.f32 %v818, 1.0
        %v825 = vsub.f32 %v820, 1.0
        %v826 = vsub.f32 %v822, 1.0
        %v827 = vmul.f32 %v823, 1.6732632
        %v828 = vmul.f32 %v824, 1.6732632
        %v829 = vmul.f32 %v825, 1.6732632
        %v830 = vmul.f32 %v826, 1.6732632
        %v831 = vsel %vm807, %v803, %v827
        %v832 = vsel %vm808, %v804, %v828
        %v833 = vsel %vm809, %v805, %v829
        %v834 = vsel %vm810, %v806, %v830
        %v835 = vmul.f32 %v831, 1.050701
        %v836 = vmul.f32 %v832, 1.050701
        %v837 = vmul.f32 %v833, 1.050701
        %v838 = vmul.f32 %v834, 1.050701
        %843 = vrot.lane.b32.xlu0 %v835, 127
        %v844 = vpop.permute.xlu0 %843
        %845 = vrot.lane.b32.xlu0 %v836, 127
        %v846 = vpop.permute.xlu0 %845
        %847 = vrot.lane.b32.xlu0 %v837, 127
        %v848 = vpop.permute.xlu0 %847
        %849 = vrot.lane.b32.xlu0 %v838, 127
        %v850 = vpop.permute.xlu0 %849
        %856 = vset.pattern.permute.xlu0 0
        %857 = vperm.xlu0 %856, %v539
        %v858 = vpop.permute.xlu0 %857
        %861 = vset.pattern.permute.xlu0 0
        %862 = vperm.xlu0 %861, %v540
        %v863 = vpop.permute.xlu0 %862
        %866 = vset.pattern.permute.xlu0 0
        %867 = vperm.xlu0 %866, %v541
        %v868 = vpop.permute.xlu0 %867
        %871 = vset.pattern.permute.xlu0 0
        %872 = vperm.xlu0 %871, %v542
        %v873 = vpop.permute.xlu0 %872
        %vm875 = vcmask 523264
        %v877 = vsel %vm875, %v535, 0
        %v880 = vsel %vm875, %v536, 0
        %v883 = vsel %vm875, %v537, 0
        %v886 = vsel %vm875, %v538, 0
        %888 = vmatprep.subr.mxu0 0.0
        %889 = vmatpush1.msra.mxu0 %v835
        %890 = vmatprep.subr.mxu0 0.0
        %891 = vmatpush1.msra.mxu0 %v836
        %892 = vmatprep.subr.mxu0 0.0
        %893 = vmatpush1.msra.mxu0 %v837
        %894 = vmatprep.subr.mxu0 0.0
        %895 = vmatpush1.msra.mxu0 %v838
        %896 = vmatprep.subr.mxu0 0.0
        %897 = vmatpush1.msra.mxu0 %v844
        %898 = vmatprep.subr.mxu0 0.0
        %899 = vmatpush1.msra.mxu0 %v846
        %900 = vmatprep.subr.mxu0 0.0
        %901 = vmatpush1.msra.mxu0 %v848
        %902 = vmatprep.subr.mxu0 0.0
        %903 = vmatpush1.msra.mxu0 %v850
        %904 = vmatprep.subr.mxu0 0.0
        %905 = vmatpush1.msra.mxu0 0.0
        %906 = vmatprep.subr.mxu0 0.0
        %907 = vmatpush1.msra.mxu0 0.0
        %908 = vmatprep.subr.mxu0 0.0
        %909 = vmatpush1.msra.mxu0 0.0
        %910 = vmatprep.subr.mxu0 0.0
        %911 = vmatpush1.msra.mxu0 0.0
        %912 = vmatprep.subr.mxu0 0.0
        %913 = vmatpush1.msra.mxu0 0.0
        %914 = vmatprep.subr.mxu0 0.0
        %915 = vmatpush1.msra.mxu0 0.0
        %916 = vmatprep.subr.mxu0 0.0
        %917 = vmatpush1.msra.mxu0 0.0
        %918 = vmatprep.subr.mxu0 0.0
        %919 = vmatpush1.msra.mxu0 0.0
        %920 = vmatprep.subr.mxu0 0.0
        %921 = vmatpush1.msra.mxu0 0.0
        %922 = vmatprep.subr.mxu0 0.0
        %923 = vmatpush1.msra.mxu0 0.0
        %924 = vmatprep.subr.mxu0 0.0
        %925 = vmatpush1.msra.mxu0 0.0
        %926 = vmatprep.subr.mxu0 0.0
        %927 = vmatpush1.msra.mxu0 0.0
        %928 = vmatprep.subr.mxu0 0.0
        %929 = vmatpush1.msra.mxu0 0.0
        %930 = vmatprep.subr.mxu0 0.0
        %931 = vmatpush1.msra.mxu0 0.0
        %932 = vmatprep.subr.mxu0 0.0
        %933 = vmatpush1.msra.mxu0 0.0
        %934 = vmatprep.subr.mxu0 0.0
        %935 = vmatpush1.msra.mxu0 0.0
        %936 = vmatprep.subr.mxu0 0.0
        %937 = vmatpush1.msra.mxu0 0.0
        %938 = vmatprep.subr.mxu0 0.0
        %939 = vmatpush1.msra.mxu0 0.0
        %940 = vmatprep.subr.mxu0 0.0
        %941 = vmatpush1.msra.mxu0 0.0
        %942 = vmatprep.subr.mxu0 0.0
        %943 = vmatpush1.msra.mxu0 0.0
        %944 = vmatprep.subr.mxu0 0.0
        %945 = vmatpush1.msra.mxu0 0.0
        %946 = vmatprep.subr.mxu0 0.0
        %947 = vmatpush1.msra.mxu0 0.0
        %948 = vmatprep.subr.mxu0 0.0
        %949 = vmatpush1.msra.mxu0 0.0
        %950 = vmatprep.subr.mxu0 0.0
        %951 = vmatpush1.msra.mxu0 0.0
        %952 = vmatprep.mubr.f32.mxu0 0.0
        %953 = vmatmul.mubr.f32.gmra.mrb[0].mxu0 %v877
        %v954 = vpop.f32.mrb[0].mxu0
        %v955 = vadd.f32 %v858, %v954
        %v956 = vpop.f32.mrb[0].mxu0
        %957 = vmatprep.mubr.f32.mxu0 0.0
        %958 = vmatmul.mubr.f32.gmra.mrb[0].mxu0 %v880
        %v959 = vpop.f32.mrb[0].mxu0
        %v960 = vadd.f32 %v863, %v959
        %v961 = vpop.f32.mrb[0].mxu0
        %962 = vmatprep.mubr.f32.mxu0 0.0
        %963 = vmatmul.mubr.f32.gmra.mrb[0].mxu0 %v883
        %v964 = vpop.f32.mrb[0].mxu0
        %v965 = vadd.f32 %v868, %v964
        %v966 = vpop.f32.mrb[0].mxu0
        %967 = vmatprep.mubr.f32.mxu0 0.0
        %968 = vmatmul.mubr.f32.gmra.mrb[0].mxu0 %v886
        %v969 = vpop.f32.mrb[0].mxu0
        %v970 = vadd.f32 %v873, %v969
        %v971 = vpop.f32.mrb[0].mxu0
        %972 = vdwg.mxu0
        %vm973 = vcmp.gt.f32.partialorder %v955, 0.0
        %vm974 = vcmp.gt.f32.partialorder %v960, 0.0
        %vm975 = vcmp.gt.f32.partialorder %v965, 0.0
        %vm976 = vcmp.gt.f32.partialorder %v970, 0.0
        %v977 = vmin.f32 %v955, 0.0
        %v978 = vmin.f32 %v960, 0.0
        %v979 = vmin.f32 %v965, 0.0
        %v980 = vmin.f32 %v970, 0.0
        %v981 = vmul.f32 %v977, 1.442695
        %v982 = vpow.pop %v981
        %v983 = vmul.f32 %v978, 1.442695
        %v984 = vpow.pop %v983
        %v985 = vmul.f32 %v979, 1.442695
        %v986 = vpow.pop %v985
        %v987 = vmul.f32 %v980, 1.442695
        %v988 = vpow.pop %v987
        %v989 = vsub.f32 %v982, 1.0
        %v990 = vsub.f32 %v984, 1.0
        %v991 = vsub.f32 %v986, 1.0
        %v992 = vsub.f32 %v988, 1.0
        %v993 = vmul.f32 %v989, 1.6732632
        %v994 = vmul.f32 %v990, 1.6732632
        %v995 = vmul.f32 %v991, 1.6732632
        %v996 = vmul.f32 %v992, 1.6732632
        %v997 = vsel %vm973, %v955, %v993
        %v998 = vsel %vm974, %v960, %v994
        %v999 = vsel %vm975, %v965, %v995
        %v1000 = vsel %vm976, %v970, %v996
        %v1001 = vmul.f32 %v997, 1.050701
        %v1002 = vmul.f32 %v998, 1.050701
        %v1003 = vmul.f32 %v999, 1.050701
        %v1004 = vmul.f32 %v1000, 1.050701
        %1006 = vset.pattern.permute.xlu0 0
        %1007 = vperm.xlu0 %1006, %v559
        %v1008 = vpop.permute.xlu0 %1007
        %1011 = vset.pattern.permute.xlu0 0
        %1012 = vperm.xlu0 %1011, %v560
        %v1013 = vpop.permute.xlu0 %1012
        %1016 = vset.pattern.permute.xlu0 0
        %1017 = vperm.xlu0 %1016, %v561
        %v1018 = vpop.permute.xlu0 %1017
        %1021 = vset.pattern.permute.xlu0 0
        %1022 = vperm.xlu0 %1021, %v562
        %v1023 = vpop.permute.xlu0 %1022
        %v1025 = vmul.f32 %v1001, %v1008
        %v1026 = vmul.f32 %v1002, %v1013
        %v1027 = vmul.f32 %v1003, %v1018
        %v1028 = vmul.f32 %v1004, %v1023
        %1029 = vset.pattern.permute.xlu0 1
        %1030 = vperm.xlu0 %1029, %v559
        %v1031 = vpop.permute.xlu0 %1030
        %1033 = vset.pattern.permute.xlu0 1
        %1034 = vperm.xlu0 %1033, %v560
        %v1035 = vpop.permute.xlu0 %1034
        %1037 = vset.pattern.permute.xlu0 1
        %1038 = vperm.xlu0 %1037, %v561
        %v1039 = vpop.permute.xlu0 %1038
        %1041 = vset.pattern.permute.xlu0 1
        %1042 = vperm.xlu0 %1041, %v562
        %v1043 = vpop.permute.xlu0 %1042
        %v1045 = vadd.f32 %v1025, %v1031
        %v1046 = vadd.f32 %v1026, %v1035
        %v1047 = vadd.f32 %v1027, %v1039
        %v1048 = vadd.f32 %v1028, %v1043
        %1049 = vxpose.xlu0.b32.start [1/16] %v1045, 128
        %1050 = vxpose.xlu0.b32.cont [2/16] %v1046, 128
        %1051 = vxpose.xlu0.b32.cont [3/16] %v1047, 128
        %1052 = vxpose.xlu0.b32.cont [4/16] %v1048, 128
        %1053 = vxpose.xlu0.b32.cont [5/16] 0.0, 128
        %1054 = vxpose.xlu0.b32.cont [6/16] 0.0, 128
        %1055 = vxpose.xlu0.b32.cont [7/16] 0.0, 128
        %1056 = vxpose.xlu0.b32.cont [8/16] 0.0, 128
        %1057 = vxpose.xlu0.b32.cont [9/16] 0.0, 128
        %1058 = vxpose.xlu0.b32.cont [10/16] 0.0, 128
        %1059 = vxpose.xlu0.b32.cont [11/16] 0.0, 128
        %1060 = vxpose.xlu0.b32.cont [12/16] 0.0, 128
        %1061 = vxpose.xlu0.b32.cont [13/16] 0.0, 128
        %1062 = vxpose.xlu0.b32.cont [14/16] 0.0, 128
        %1063 = vxpose.xlu0.b32.cont [15/16] 0.0, 128
        %1064 = vxpose.xlu0.b32.end [16/16] 0.0, 128
        %v1065 = vpop.trf.xlu0
        %v1066 = vpop.trf.xlu0
        %v1067 = vpop.trf.xlu0
        %v1068 = vpop.trf.xlu0
        %v1069 = vpop.trf.xlu0
        %v1070 = vpop.trf.xlu0
        %v1071 = vpop.trf.xlu0
        %v1072 = vpop.trf.xlu0
        %v1073 = vpop.trf.xlu0
        %v1074 = vpop.trf.xlu0
        %v1075 = vpop.trf.xlu0
        %v1076 = vpop.trf.xlu0
        %v1077 = vpop.trf.xlu0
        %v1078 = vpop.trf.xlu0
        %v1079 = vpop.trf.xlu0
        %v1080 = vpop.trf.xlu0
        %v1089 = vcombine.high %v1065, %v1065
        %v1091 = vunpack.c.l.s4 1983009808
        %v1092 = vunpack.c.0.s8 %v1091
        %v1093 = vlaneseq
        %v1094 = vshrl.u32 %v1093, 7
        %v1095 = vsub.s32 %v1092, %v1094
        %v1096 = vrot.slane %v1065, %v1095
        %v1098 = vunpack.c.l.s4 1983009808
        %v1099 = vunpack.c.0.s8 %v1098
        %v1100 = vlaneseq
        %v1101 = vshrl.u32 %v1100, 7
        %v1102 = vsub.s32 %v1099, %v1101
        %v1103 = vrot.slane %v1089, %v1102
        %v1104 = vcombine.high %v1096, %v1096
        %v1105 = vcombine.high %v1103, %v1103
        %v1106 = vcombine.high %v1066, %v1066
        %v1108 = vunpack.c.l.s4 1983009808
        %v1109 = vunpack.c.0.s8 %v1108
        %v1110 = vlaneseq
        %v1111 = vshrl.u32 %v1110, 7
        %v1112 = vsub.s32 %v1109, %v1111
        %v1113 = vrot.slane %v1066, %v1112
        %v1115 = vunpack.c.l.s4 1983009808
        %v1116 = vunpack.c.0.s8 %v1115
        %v1117 = vlaneseq
        %v1118 = vshrl.u32 %v1117, 7
        %v1119 = vsub.s32 %v1116, %v1118
        %v1120 = vrot.slane %v1106, %v1119
        %v1121 = vcombine.high %v1113, %v1113
        %v1122 = vcombine.high %v1120, %v1120
        %v1123 = vcombine.high %v1067, %v1067
        %v1125 = vunpack.c.l.s4 1983009808
        %v1126 = vunpack.c.0.s8 %v1125
        %v1127 = vlaneseq
        %v1128 = vshrl.u32 %v1127, 7
        %v1129 = vsub.s32 %v1126, %v1128
        %v1130 = vrot.slane %v1067, %v1129
        %v1132 = vunpack.c.l.s4 1983009808
        %v1133 = vunpack.c.0.s8 %v1132
        %v1134 = vlaneseq
        %v1135 = vshrl.u32 %v1134, 7
        %v1136 = vsub.s32 %v1133, %v1135
        %v1137 = vrot.slane %v1123, %v1136
        %v1138 = vcombine.high %v1130, %v1130
        %v1139 = vcombine.high %v1137, %v1137
        %v1140 = vcombine.high %v1068, %v1068
        %v1142 = vunpack.c.l.s4 1983009808
        %v1143 = vunpack.c.0.s8 %v1142
        %v1144 = vlaneseq
        %v1145 = vshrl.u32 %v1144, 7
        %v1146 = vsub.s32 %v1143, %v1145
        %v1147 = vrot.slane %v1068, %v1146
        %v1149 = vunpack.c.l.s4 1983009808
        %v1150 = vunpack.c.0.s8 %v1149
        %v1151 = vlaneseq
        %v1152 = vshrl.u32 %v1151, 7
        %v1153 = vsub.s32 %v1150, %v1152
        %v1154 = vrot.slane %v1140, %v1153
        %v1155 = vcombine.high %v1147, %v1147
        %v1156 = vcombine.high %v1154, %v1154
        %v1157 = vcombine.high %v1069, %v1069
        %v1159 = vunpack.c.l.s4 1983009808
        %v1160 = vunpack.c.0.s8 %v1159
        %v1161 = vlaneseq
        %v1162 = vshrl.u32 %v1161, 7
        %v1163 = vsub.s32 %v1160, %v1162
        %v1164 = vrot.slane %v1069, %v1163
        %v1166 = vunpack.c.l.s4 1983009808
        %v1167 = vunpack.c.0.s8 %v1166
        %v1168 = vlaneseq
        %v1169 = vshrl.u32 %v1168, 7
        %v1170 = vsub.s32 %v1167, %v1169
        %v1171 = vrot.slane %v1157, %v1170
        %v1172 = vcombine.high %v1164, %v1164
        %v1173 = vcombine.high %v1171, %v1171
        %v1174 = vcombine.high %v1070, %v1070
        %v1176 = vunpack.c.l.s4 1983009808
        %v1177 = vunpack.c.0.s8 %v1176
        %v1178 = vlaneseq
        %v1179 = vshrl.u32 %v1178, 7
        %v1180 = vsub.s32 %v1177, %v1179
        %v1181 = vrot.slane %v1070, %v1180
        %v1183 = vunpack.c.l.s4 1983009808
        %v1184 = vunpack.c.0.s8 %v1183
        %v1185 = vlaneseq
        %v1186 = vshrl.u32 %v1185, 7
        %v1187 = vsub.s32 %v1184, %v1186
        %v1188 = vrot.slane %v1174, %v1187
        %v1189 = vcombine.high %v1181, %v1181
        %v1190 = vcombine.high %v1188, %v1188
        %v1191 = vcombine.high %v1071, %v1071
        %v1193 = vunpack.c.l.s4 1983009808
        %v1194 = vunpack.c.0.s8 %v1193
        %v1195 = vlaneseq
        %v1196 = vshrl.u32 %v1195, 7
        %v1197 = vsub.s32 %v1194, %v1196
        %v1198 = vrot.slane %v1071, %v1197
        %v1200 = vunpack.c.l.s4 1983009808
        %v1201 = vunpack.c.0.s8 %v1200
        %v1202 = vlaneseq
        %v1203 = vshrl.u32 %v1202, 7
        %v1204 = vsub.s32 %v1201, %v1203
        %v1205 = vrot.slane %v1191, %v1204
        %v1206 = vcombine.high %v1198, %v1198
        %v1207 = vcombine.high %v1205, %v1205
        %v1208 = vcombine.high %v1072, %v1072
        %v1210 = vunpack.c.l.s4 1983009808
        %v1211 = vunpack.c.0.s8 %v1210
        %v1212 = vlaneseq
        %v1213 = vshrl.u32 %v1212, 7
        %v1214 = vsub.s32 %v1211, %v1213
        %v1215 = vrot.slane %v1072, %v1214
        %v1217 = vunpack.c.l.s4 1983009808
        %v1218 = vunpack.c.0.s8 %v1217
        %v1219 = vlaneseq
        %v1220 = vshrl.u32 %v1219, 7
        %v1221 = vsub.s32 %v1218, %v1220
        %v1222 = vrot.slane %v1208, %v1221
        %v1223 = vcombine.high %v1215, %v1215
        %vm1255 = vcmask 254976
        %v1256 = vsel %vm1255, %v1096, -inf
        %v1257 = vrot.slane %v1256, 4
        %v1258 = vmax.f32 %v1256, %v1257
        %v1259 = vrot.slane %v1258, 2
        %v1260 = vmax.f32 %v1258, %v1259
        %v1261 = vrot.slane %v1260, 1
        %v1262 = vmax.f32 %v1260, %v1261
        %v1263 = vsel %vm1255, %v1104, -inf
        %v1264 = vrot.slane %v1263, 4
        %v1265 = vmax.f32 %v1263, %v1264
        %v1266 = vrot.slane %v1265, 2
        %v1267 = vmax.f32 %v1265, %v1266
        %v1268 = vrot.slane %v1267, 1
        %v1269 = vmax.f32 %v1267, %v1268
        %v1270 = vsel %vm1255, %v1103, -inf
        %v1271 = vrot.slane %v1270, 4
        %v1272 = vmax.f32 %v1270, %v1271
        %v1273 = vrot.slane %v1272, 2
        %v1274 = vmax.f32 %v1272, %v1273
        %v1275 = vrot.slane %v1274, 1
        %v1276 = vmax.f32 %v1274, %v1275
        %v1277 = vsel %vm1255, %v1105, -inf
        %v1278 = vrot.slane %v1277, 4
        %v1279 = vmax.f32 %v1277, %v1278
        %v1280 = vrot.slane %v1279, 2
        %v1281 = vmax.f32 %v1279, %v1280
        %v1282 = vrot.slane %v1281, 1
        %v1283 = vmax.f32 %v1281, %v1282
        %v1284 = vsel %vm1255, %v1113, -inf
        %v1285 = vrot.slane %v1284, 4
        %v1286 = vmax.f32 %v1284, %v1285
        %v1287 = vrot.slane %v1286, 2
        %v1288 = vmax.f32 %v1286, %v1287
        %v1289 = vrot.slane %v1288, 1
        %v1290 = vmax.f32 %v1288, %v1289
        %v1291 = vsel %vm1255, %v1121, -inf
        %v1292 = vrot.slane %v1291, 4
        %v1293 = vmax.f32 %v1291, %v1292
        %v1294 = vrot.slane %v1293, 2
        %v1295 = vmax.f32 %v1293, %v1294
        %v1296 = vrot.slane %v1295, 1
        %v1297 = vmax.f32 %v1295, %v1296
        %v1298 = vsel %vm1255, %v1120, -inf
        %v1299 = vrot.slane %v1298, 4
        %v1300 = vmax.f32 %v1298, %v1299
        %v1301 = vrot.slane %v1300, 2
        %v1302 = vmax.f32 %v1300, %v1301
        %v1303 = vrot.slane %v1302, 1
        %v1304 = vmax.f32 %v1302, %v1303
        %v1305 = vsel %vm1255, %v1122, -inf
        %v1306 = vrot.slane %v1305, 4
        %v1307 = vmax.f32 %v1305, %v1306
        %v1308 = vrot.slane %v1307, 2
        %v1309 = vmax.f32 %v1307, %v1308
        %v1310 = vrot.slane %v1309, 1
        %v1311 = vmax.f32 %v1309, %v1310
        %v1312 = vsel %vm1255, %v1130, -inf
        %v1313 = vrot.slane %v1312, 4
        %v1314 = vmax.f32 %v1312, %v1313
        %v1315 = vrot.slane %v1314, 2
        %v1316 = vmax.f32 %v1314, %v1315
        %v1317 = vrot.slane %v1316, 1
        %v1318 = vmax.f32 %v1316, %v1317
        %v1319 = vsel %vm1255, %v1138, -inf
        %v1320 = vrot.slane %v1319, 4
        %v1321 = vmax.f32 %v1319, %v1320
        %v1322 = vrot.slane %v1321, 2
        %v1323 = vmax.f32 %v1321, %v1322
        %v1324 = vrot.slane %v1323, 1
        %v1325 = vmax.f32 %v1323, %v1324
        %v1326 = vsel %vm1255, %v1137, -inf
        %v1327 = vrot.slane %v1326, 4
        %v1328 = vmax.f32 %v1326, %v1327
        %v1329 = vrot.slane %v1328, 2
        %v1330 = vmax.f32 %v1328, %v1329
        %v1331 = vrot.slane %v1330, 1
        %v1332 = vmax.f32 %v1330, %v1331
        %v1333 = vsel %vm1255, %v1139, -inf
        %v1334 = vrot.slane %v1333, 4
        %v1335 = vmax.f32 %v1333, %v1334
        %v1336 = vrot.slane %v1335, 2
        %v1337 = vmax.f32 %v1335, %v1336
        %v1338 = vrot.slane %v1337, 1
        %v1339 = vmax.f32 %v1337, %v1338
        %v1340 = vsel %vm1255, %v1147, -inf
        %v1341 = vrot.slane %v1340, 4
        %v1342 = vmax.f32 %v1340, %v1341
        %v1343 = vrot.slane %v1342, 2
        %v1344 = vmax.f32 %v1342, %v1343
        %v1345 = vrot.slane %v1344, 1
        %v1346 = vmax.f32 %v1344, %v1345
        %v1347 = vsel %vm1255, %v1155, -inf
        %v1348 = vrot.slane %v1347, 4
        %v1349 = vmax.f32 %v1347, %v1348
        %v1350 = vrot.slane %v1349, 2
        %v1351 = vmax.f32 %v1349, %v1350
        %v1352 = vrot.slane %v1351, 1
        %v1353 = vmax.f32 %v1351, %v1352
        %v1354 = vsel %vm1255, %v1154, -inf
        %v1355 = vrot.slane %v1354, 4
        %v1356 = vmax.f32 %v1354, %v1355
        %v1357 = vrot.slane %v1356, 2
        %v1358 = vmax.f32 %v1356, %v1357
        %v1359 = vrot.slane %v1358, 1
        %v1360 = vmax.f32 %v1358, %v1359
        %v1361 = vsel %vm1255, %v1156, -inf
        %v1362 = vrot.slane %v1361, 4
        %v1363 = vmax.f32 %v1361, %v1362
        %v1364 = vrot.slane %v1363, 2
        %v1365 = vmax.f32 %v1363, %v1364
        %v1366 = vrot.slane %v1365, 1
        %v1367 = vmax.f32 %v1365, %v1366
        %v1368 = vsel %vm1255, %v1164, -inf
        %v1369 = vrot.slane %v1368, 4
        %v1370 = vmax.f32 %v1368, %v1369
        %v1371 = vrot.slane %v1370, 2
        %v1372 = vmax.f32 %v1370, %v1371
        %v1373 = vrot.slane %v1372, 1
        %v1374 = vmax.f32 %v1372, %v1373
        %v1375 = vsel %vm1255, %v1172, -inf
        %v1376 = vrot.slane %v1375, 4
        %v1377 = vmax.f32 %v1375, %v1376
        %v1378 = vrot.slane %v1377, 2
        %v1379 = vmax.f32 %v1377, %v1378
        %v1380 = vrot.slane %v1379, 1
        %v1381 = vmax.f32 %v1379, %v1380
        %v1382 = vsel %vm1255, %v1171, -inf
        %v1383 = vrot.slane %v1382, 4
        %v1384 = vmax.f32 %v1382, %v1383
        %v1385 = vrot.slane %v1384, 2
        %v1386 = vmax.f32 %v1384, %v1385
        %v1387 = vrot.slane %v1386, 1
        %v1388 = vmax.f32 %v1386, %v1387
        %v1389 = vsel %vm1255, %v1173, -inf
        %v1390 = vrot.slane %v1389, 4
        %v1391 = vmax.f32 %v1389, %v1390
        %v1392 = vrot.slane %v1391, 2
        %v1393 = vmax.f32 %v1391, %v1392
        %v1394 = vrot.slane %v1393, 1
        %v1395 = vmax.f32 %v1393, %v1394
        %v1396 = vsel %vm1255, %v1181, -inf
        %v1397 = vrot.slane %v1396, 4
        %v1398 = vmax.f32 %v1396, %v1397
        %v1399 = vrot.slane %v1398, 2
        %v1400 = vmax.f32 %v1398, %v1399
        %v1401 = vrot.slane %v1400, 1
        %v1402 = vmax.f32 %v1400, %v1401
        %v1403 = vsel %vm1255, %v1189, -inf
        %v1404 = vrot.slane %v1403, 4
        %v1405 = vmax.f32 %v1403, %v1404
        %v1406 = vrot.slane %v1405, 2
        %v1407 = vmax.f32 %v1405, %v1406
        %v1408 = vrot.slane %v1407, 1
        %v1409 = vmax.f32 %v1407, %v1408
        %v1410 = vsel %vm1255, %v1188, -inf
        %v1411 = vrot.slane %v1410, 4
        %v1412 = vmax.f32 %v1410, %v1411
        %v1413 = vrot.slane %v1412, 2
        %v1414 = vmax.f32 %v1412, %v1413
        %v1415 = vrot.slane %v1414, 1
        %v1416 = vmax.f32 %v1414, %v1415
        %v1417 = vsel %vm1255, %v1190, -inf
        %v1418 = vrot.slane %v1417, 4
        %v1419 = vmax.f32 %v1417, %v1418
        %v1420 = vrot.slane %v1419, 2
        %v1421 = vmax.f32 %v1419, %v1420
        %v1422 = vrot.slane %v1421, 1
        %v1423 = vmax.f32 %v1421, %v1422
        %v1424 = vsel %vm1255, %v1198, -inf
        %v1425 = vrot.slane %v1424, 4
        %v1426 = vmax.f32 %v1424, %v1425
        %v1427 = vrot.slane %v1426, 2
        %v1428 = vmax.f32 %v1426, %v1427
        %v1429 = vrot.slane %v1428, 1
        %v1430 = vmax.f32 %v1428, %v1429
        %v1431 = vsel %vm1255, %v1206, -inf
        %v1432 = vrot.slane %v1431, 4
        %v1433 = vmax.f32 %v1431, %v1432
        %v1434 = vrot.slane %v1433, 2
        %v1435 = vmax.f32 %v1433, %v1434
        %v1436 = vrot.slane %v1435, 1
        %v1437 = vmax.f32 %v1435, %v1436
        %v1438 = vsel %vm1255, %v1205, -inf
        %v1439 = vrot.slane %v1438, 4
        %v1440 = vmax.f32 %v1438, %v1439
        %v1441 = vrot.slane %v1440, 2
        %v1442 = vmax.f32 %v1440, %v1441
        %v1443 = vrot.slane %v1442, 1
        %v1444 = vmax.f32 %v1442, %v1443
        %v1445 = vsel %vm1255, %v1207, -inf
        %v1446 = vrot.slane %v1445, 4
        %v1447 = vmax.f32 %v1445, %v1446
        %v1448 = vrot.slane %v1447, 2
        %v1449 = vmax.f32 %v1447, %v1448
        %v1450 = vrot.slane %v1449, 1
        %v1451 = vmax.f32 %v1449, %v1450
        %v1452 = vsel %vm1255, %v1215, -inf
        %v1453 = vrot.slane %v1452, 4
        %v1454 = vmax.f32 %v1452, %v1453
        %v1455 = vrot.slane %v1454, 2
        %v1456 = vmax.f32 %v1454, %v1455
        %v1457 = vrot.slane %v1456, 1
        %v1458 = vmax.f32 %v1456, %v1457
        %v1459 = vsel %vm1255, %v1223, -inf
        %v1460 = vrot.slane %v1459, 4
        %v1461 = vmax.f32 %v1459, %v1460
        %v1462 = vrot.slane %v1461, 2
        %v1463 = vmax.f32 %v1461, %v1462
        %v1464 = vrot.slane %v1463, 1
        %v1465 = vmax.f32 %v1463, %v1464
        %v1466 = vsel %vm1255, %v1222, -inf
        %v1467 = vrot.slane %v1466, 4
        %v1468 = vmax.f32 %v1466, %v1467
        %v1469 = vrot.slane %v1468, 2
        %v1470 = vmax.f32 %v1468, %v1469
        %v1471 = vrot.slane %v1470, 1
        %v1472 = vmax.f32 %v1470, %v1471
        %vm1504 = vcmask 1041409
        %v1505 = vsel %vm1504, %v1269, %v1262
        %vm1506 = vcmask 1042434
        %v1507 = vsel %vm1506, %v1276, %v1505
        %vm1508 = vcmask 1043459
        %v1509 = vsel %vm1508, %v1283, %v1507
        %vm1510 = vcmask 1044484
        %v1511 = vsel %vm1510, %v1290, %v1509
        %vm1512 = vcmask 1045509
        %v1513 = vsel %vm1512, %v1297, %v1511
        %vm1514 = vcmask 1046534
        %v1515 = vsel %vm1514, %v1304, %v1513
        %vm1516 = vcmask 1047559
        %v1517 = vsel %vm1516, %v1311, %v1515
        %v1518 = vsel %vm1504, %v1325, %v1318
        %v1519 = vsel %vm1506, %v1332, %v1518
        %v1520 = vsel %vm1508, %v1339, %v1519
        %v1521 = vsel %vm1510, %v1346, %v1520
        %v1522 = vsel %vm1512, %v1353, %v1521
        %v1523 = vsel %vm1514, %v1360, %v1522
        %v1524 = vsel %vm1516, %v1367, %v1523
        %v1525 = vsel %vm1504, %v1381, %v1374
        %v1526 = vsel %vm1506, %v1388, %v1525
        %v1527 = vsel %vm1508, %v1395, %v1526
        %v1528 = vsel %vm1510, %v1402, %v1527
        %v1529 = vsel %vm1512, %v1409, %v1528
        %v1530 = vsel %vm1514, %v1416, %v1529
        %v1531 = vsel %vm1516, %v1423, %v1530
        %v1532 = vsel %vm1504, %v1437, %v1430
        %v1533 = vsel %vm1506, %v1444, %v1532
        %v1534 = vsel %vm1508, %v1451, %v1533
        %v1535 = vsel %vm1510, %v1458, %v1534
        %v1536 = vsel %vm1512, %v1465, %v1535
        %v1537 = vsel %vm1514, %v1472, %v1536
        %1542 = vxpose.xlu0.b32.start [1/16] %v1517, 128
        %1543 = vxpose.xlu0.b32.cont [2/16] %v1524, 128
        %1544 = vxpose.xlu0.b32.cont [3/16] %v1531, 128
        %1545 = vxpose.xlu0.b32.cont [4/16] %v1537, 128
        %1546 = vxpose.xlu0.b32.cont [5/16] 0.0, 128
        %1547 = vxpose.xlu0.b32.cont [6/16] 0.0, 128
        %1548 = vxpose.xlu0.b32.cont [7/16] 0.0, 128
        %1549 = vxpose.xlu0.b32.cont [8/16] 0.0, 128
        %1550 = vxpose.xlu0.b32.cont [9/16] 0.0, 128
        %1551 = vxpose.xlu0.b32.cont [10/16] 0.0, 128
        %1552 = vxpose.xlu0.b32.cont [11/16] 0.0, 128
        %1553 = vxpose.xlu0.b32.cont [12/16] 0.0, 128
        %1554 = vxpose.xlu0.b32.cont [13/16] 0.0, 128
        %1555 = vxpose.xlu0.b32.cont [14/16] 0.0, 128
        %1556 = vxpose.xlu0.b32.cont [15/16] 0.0, 128
        %1557 = vxpose.xlu0.b32.end [16/16] 0.0, 128
        %v1558 = vpop.trf.xlu0
        %v1559 = vpop.trf.xlu0
        %v1560 = vpop.trf.xlu0
        %v1561 = vpop.trf.xlu0
        %v1562 = vpop.trf.xlu0
        %v1563 = vpop.trf.xlu0
        %v1564 = vpop.trf.xlu0
        %v1565 = vpop.trf.xlu0
        %v1566 = vpop.trf.xlu0
        %v1567 = vpop.trf.xlu0
        %v1568 = vpop.trf.xlu0
        %v1569 = vpop.trf.xlu0
        %v1570 = vpop.trf.xlu0
        %v1571 = vpop.trf.xlu0
        %v1572 = vpop.trf.xlu0
        %v1573 = vpop.trf.xlu0
        %1578 = vrot.lane.b32.xlu0 %v1558, 127
        %v1579 = vpop.permute.xlu0 %1578
        %1580 = vrot.lane.b32.xlu0 %v1559, 127
        %v1581 = vpop.permute.xlu0 %1580
        %1582 = vrot.lane.b32.xlu0 %v1560, 127
        %v1583 = vpop.permute.xlu0 %1582
        %1584 = vrot.lane.b32.xlu0 %v1561, 127
        %v1585 = vpop.permute.xlu0 %1584
        %1591 = vset.pattern.permute.xlu0 0
        %1592 = vperm.xlu0 %1591, %v545
        %v1593 = vpop.permute.xlu0 %1592
        %1596 = vset.pattern.permute.xlu0 0
        %1597 = vperm.xlu0 %1596, %v546
        %v1598 = vpop.permute.xlu0 %1597
        %v1601 = vsel %vm875, %v543, 0
        %v1604 = vsel %vm875, %v544, 0
        %1606 = vmatprep.subr.mxu0 0.0
        %1607 = vmatpush1.msra.mxu0 %v1558
        %1608 = vmatprep.subr.mxu0 0.0
        %1609 = vmatpush1.msra.mxu0 %v1559
        %1610 = vmatprep.subr.mxu0 0.0
        %1611 = vmatpush1.msra.mxu0 %v1560
        %1612 = vmatprep.subr.mxu0 0.0
        %1613 = vmatpush1.msra.mxu0 %v1561
        %1614 = vmatprep.subr.mxu0 0.0
        %1615 = vmatpush1.msra.mxu0 %v1579
        %1616 = vmatprep.subr.mxu0 0.0
        %1617 = vmatpush1.msra.mxu0 %v1581
        %1618 = vmatprep.subr.mxu0 0.0
        %1619 = vmatpush1.msra.mxu0 %v1583
        %1620 = vmatprep.subr.mxu0 0.0
        %1621 = vmatpush1.msra.mxu0 %v1585
        %1622 = vmatprep.subr.mxu0 0.0
        %1623 = vmatpush1.msra.mxu0 0.0
        %1624 = vmatprep.subr.mxu0 0.0
        %1625 = vmatpush1.msra.mxu0 0.0
        %1626 = vmatprep.subr.mxu0 0.0
        %1627 = vmatpush1.msra.mxu0 0.0
        %1628 = vmatprep.subr.mxu0 0.0
        %1629 = vmatpush1.msra.mxu0 0.0
        %1630 = vmatprep.subr.mxu0 0.0
        %1631 = vmatpush1.msra.mxu0 0.0
        %1632 = vmatprep.subr.mxu0 0.0
        %1633 = vmatpush1.msra.mxu0 0.0
        %1634 = vmatprep.subr.mxu0 0.0
        %1635 = vmatpush1.msra.mxu0 0.0
        %1636 = vmatprep.subr.mxu0 0.0
        %1637 = vmatpush1.msra.mxu0 0.0
        %1638 = vmatprep.subr.mxu0 0.0
        %1639 = vmatpush1.msra.mxu0 0.0
        %1640 = vmatprep.subr.mxu0 0.0
        %1641 = vmatpush1.msra.mxu0 0.0
        %1642 = vmatprep.subr.mxu0 0.0
        %1643 = vmatpush1.msra.mxu0 0.0
        %1644 = vmatprep.subr.mxu0 0.0
        %1645 = vmatpush1.msra.mxu0 0.0
        %1646 = vmatprep.subr.mxu0 0.0
        %1647 = vmatpush1.msra.mxu0 0.0
        %1648 = vmatprep.subr.mxu0 0.0
        %1649 = vmatpush1.msra.mxu0 0.0
        %1650 = vmatprep.subr.mxu0 0.0
        %1651 = vmatpush1.msra.mxu0 0.0
        %1652 = vmatprep.subr.mxu0 0.0
        %1653 = vmatpush1.msra.mxu0 0.0
        %1654 = vmatprep.subr.mxu0 0.0
        %1655 = vmatpush1.msra.mxu0 0.0
        %1656 = vmatprep.subr.mxu0 0.0
        %1657 = vmatpush1.msra.mxu0 0.0
        %1658 = vmatprep.subr.mxu0 0.0
        %1659 = vmatpush1.msra.mxu0 0.0
        %1660 = vmatprep.subr.mxu0 0.0
        %1661 = vmatpush1.msra.mxu0 0.0
        %1662 = vmatprep.subr.mxu0 0.0
        %1663 = vmatpush1.msra.mxu0 0.0
        %1664 = vmatprep.subr.mxu0 0.0
        %1665 = vmatpush1.msra.mxu0 0.0
        %1666 = vmatprep.subr.mxu0 0.0
        %1667 = vmatpush1.msra.mxu0 0.0
        %1668 = vmatprep.subr.mxu0 0.0
        %1669 = vmatpush1.msra.mxu0 0.0
        %1670 = vmatprep.mubr.f32.mxu0 0.0
        %1671 = vmatmul.mubr.f32.gmra.mrb[0].mxu0 %v1601
        %v1672 = vpop.f32.mrb[0].mxu0
        %v1673 = vadd.f32 %v1593, %v1672
        %v1674 = vpop.f32.mrb[0].mxu0
        %1675 = vmatprep.mubr.f32.mxu0 0.0
        %1676 = vmatmul.mubr.f32.gmra.mrb[0].mxu0 %v1604
        %v1677 = vpop.f32.mrb[0].mxu0
        %v1678 = vadd.f32 %v1598, %v1677
        %v1679 = vpop.f32.mrb[0].mxu0
        %1680 = vdwg.mxu0
        %vm1681 = vcmp.gt.f32.partialorder %v1673, 0.0
        %vm1682 = vcmp.gt.f32.partialorder %v1678, 0.0
        %v1683 = vmin.f32 %v1673, 0.0
        %v1684 = vmin.f32 %v1678, 0.0
        %v1685 = vmul.f32 %v1683, 1.442695
        %v1686 = vpow.pop %v1685
        %v1687 = vmul.f32 %v1684, 1.442695
        %v1688 = vpow.pop %v1687
        %v1689 = vsub.f32 %v1686, 1.0
        %v1690 = vsub.f32 %v1688, 1.0
        %v1691 = vmul.f32 %v1689, 1.6732632
        %v1692 = vmul.f32 %v1690, 1.6732632
        %v1693 = vsel %vm1681, %v1673, %v1691
        %v1694 = vsel %vm1682, %v1678, %v1692
        %v1695 = vmul.f32 %v1693, 1.050701
        %v1696 = vmul.f32 %v1694, 1.050701
        %1699 = vrot.lane.b32.xlu0 %v1695, 127
        %v1700 = vpop.permute.xlu0 %1699
        %1701 = vrot.lane.b32.xlu0 %v1696, 127
        %v1702 = vpop.permute.xlu0 %1701
        %1706 = vset.pattern.permute.xlu0 0
        %1707 = vperm.xlu0 %1706, %v549
        %v1708 = vpop.permute.xlu0 %1707
        %1711 = vset.pattern.permute.xlu0 0
        %1712 = vperm.xlu0 %1711, %v550
        %v1713 = vpop.permute.xlu0 %1712
        %vm1715 = vcmask 261120
        %v1717 = vsel %vm1715, %v547, 0
        %v1720 = vsel %vm1715, %v548, 0
        %1722 = vmatprep.subr.mxu0 0.0
        %1723 = vmatpush1.msra.mxu0 %v1695
        %1724 = vmatprep.subr.mxu0 0.0
        %1725 = vmatpush1.msra.mxu0 %v1696
        %1726 = vmatprep.subr.mxu0 0.0
        %1727 = vmatpush1.msra.mxu0 %v1700
        %1728 = vmatprep.subr.mxu0 0.0
        %1729 = vmatpush1.msra.mxu0 %v1702
        %1730 = vmatprep.subr.mxu0 0.0
        %1731 = vmatpush1.msra.mxu0 0.0
        %1732 = vmatprep.subr.mxu0 0.0
        %1733 = vmatpush1.msra.mxu0 0.0
        %1734 = vmatprep.subr.mxu0 0.0
        %1735 = vmatpush1.msra.mxu0 0.0
        %1736 = vmatprep.subr.mxu0 0.0
        %1737 = vmatpush1.msra.mxu0 0.0
        %1738 = vmatprep.subr.mxu0 0.0
        %1739 = vmatpush1.msra.mxu0 0.0
        %1740 = vmatprep.subr.mxu0 0.0
        %1741 = vmatpush1.msra.mxu0 0.0
        %1742 = vmatprep.subr.mxu0 0.0
        %1743 = vmatpush1.msra.mxu0 0.0
        %1744 = vmatprep.subr.mxu0 0.0
        %1745 = vmatpush1.msra.mxu0 0.0
        %1746 = vmatprep.subr.mxu0 0.0
        %1747 = vmatpush1.msra.mxu0 0.0
        %1748 = vmatprep.subr.mxu0 0.0
        %1749 = vmatpush1.msra.mxu0 0.0
        %1750 = vmatprep.subr.mxu0 0.0
        %1751 = vmatpush1.msra.mxu0 0.0
        %1752 = vmatprep.subr.mxu0 0.0
        %1753 = vmatpush1.msra.mxu0 0.0
        %1754 = vmatprep.subr.mxu0 0.0
        %1755 = vmatpush1.msra.mxu0 0.0
        %1756 = vmatprep.subr.mxu0 0.0
        %1757 = vmatpush1.msra.mxu0 0.0
        %1758 = vmatprep.subr.mxu0 0.0
        %1759 = vmatpush1.msra.mxu0 0.0
        %1760 = vmatprep.subr.mxu0 0.0
        %1761 = vmatpush1.msra.mxu0 0.0
        %1762 = vmatprep.subr.mxu0 0.0
        %1763 = vmatpush1.msra.mxu0 0.0
        %1764 = vmatprep.subr.mxu0 0.0
        %1765 = vmatpush1.msra.mxu0 0.0
        %1766 = vmatprep.subr.mxu0 0.0
        %1767 = vmatpush1.msra.mxu0 0.0
        %1768 = vmatprep.subr.mxu0 0.0
        %1769 = vmatpush1.msra.mxu0 0.0
        %1770 = vmatprep.subr.mxu0 0.0
        %1771 = vmatpush1.msra.mxu0 0.0
        %1772 = vmatprep.subr.mxu0 0.0
        %1773 = vmatpush1.msra.mxu0 0.0
        %1774 = vmatprep.subr.mxu0 0.0
        %1775 = vmatpush1.msra.mxu0 0.0
        %1776 = vmatprep.subr.mxu0 0.0
        %1777 = vmatpush1.msra.mxu0 0.0
        %1778 = vmatprep.subr.mxu0 0.0
        %1779 = vmatpush1.msra.mxu0 0.0
        %1780 = vmatprep.subr.mxu0 0.0
        %1781 = vmatpush1.msra.mxu0 0.0
        %1782 = vmatprep.subr.mxu0 0.0
        %1783 = vmatpush1.msra.mxu0 0.0
        %1784 = vmatprep.subr.mxu0 0.0
        %1785 = vmatpush1.msra.mxu0 0.0
        %1786 = vmatprep.mubr.f32.mxu0 0.0
        %1787 = vmatmul.mubr.f32.gmra.mrb[0].mxu0 %v1717
        %v1788 = vpop.f32.mrb[0].mxu0
        %v1789 = vadd.f32 %v1708, %v1788
        %v1790 = vpop.f32.mrb[0].mxu0
        %1791 = vmatprep.mubr.f32.mxu0 0.0
        %1792 = vmatmul.mubr.f32.gmra.mrb[0].mxu0 %v1720
        %v1793 = vpop.f32.mrb[0].mxu0
        %v1794 = vadd.f32 %v1713, %v1793
        %v1795 = vpop.f32.mrb[0].mxu0
        %1796 = vdwg.mxu0
        %vm1797 = vcmp.gt.f32.partialorder %v1789, 0.0
        %vm1798 = vcmp.gt.f32.partialorder %v1794, 0.0
        %v1799 = vmin.f32 %v1789, 0.0
        %v1800 = vmin.f32 %v1794, 0.0
        %v1801 = vmul.f32 %v1799, 1.442695
        %v1802 = vpow.pop %v1801
        %v1803 = vmul.f32 %v1800, 1.442695
        %v1804 = vpow.pop %v1803
        %v1805 = vsub.f32 %v1802, 1.0
        %v1806 = vsub.f32 %v1804, 1.0
        %v1807 = vmul.f32 %v1805, 1.6732632
        %v1808 = vmul.f32 %v1806, 1.6732632
        %v1809 = vsel %vm1797, %v1789, %v1807
        %v1810 = vsel %vm1798, %v1794, %v1808
        %v1811 = vmul.f32 %v1809, 1.050701
        %v1812 = vmul.f32 %v1810, 1.050701
        %1814 = vset.pattern.permute.xlu0 0
        %1815 = vperm.xlu0 %1814, %v563
        %v1816 = vpop.permute.xlu0 %1815
        %1819 = vset.pattern.permute.xlu0 0
        %1820 = vperm.xlu0 %1819, %v564
        %v1821 = vpop.permute.xlu0 %1820
        %v1823 = vmul.f32 %v1811, %v1816
        %v1824 = vmul.f32 %v1812, %v1821
        %1825 = vset.pattern.permute.xlu0 1
        %1826 = vperm.xlu0 %1825, %v563
        %v1827 = vpop.permute.xlu0 %1826
        %1829 = vset.pattern.permute.xlu0 1
        %1830 = vperm.xlu0 %1829, %v564
        %v1831 = vpop.permute.xlu0 %1830
        %v1833 = vadd.f32 %v1823, %v1827
        %v1834 = vadd.f32 %v1824, %v1831
        %1835 = vxpose.xlu0.b32.start [1/16] %v1833, 128
        %1836 = vxpose.xlu0.b32.cont [2/16] %v1834, 128
        %1837 = vxpose.xlu0.b32.cont [3/16] 0.0, 128
        %1838 = vxpose.xlu0.b32.cont [4/16] 0.0, 128
        %1839 = vxpose.xlu0.b32.cont [5/16] 0.0, 128
        %1840 = vxpose.xlu0.b32.cont [6/16] 0.0, 128
        %1841 = vxpose.xlu0.b32.cont [7/16] 0.0, 128
        %1842 = vxpose.xlu0.b32.cont [8/16] 0.0, 128
        %1843 = vxpose.xlu0.b32.cont [9/16] 0.0, 128
        %1844 = vxpose.xlu0.b32.cont [10/16] 0.0, 128
        %1845 = vxpose.xlu0.b32.cont [11/16] 0.0, 128
        %1846 = vxpose.xlu0.b32.cont [12/16] 0.0, 128
        %1847 = vxpose.xlu0.b32.cont [13/16] 0.0, 128
        %1848 = vxpose.xlu0.b32.cont [14/16] 0.0, 128
        %1849 = vxpose.xlu0.b32.cont [15/16] 0.0, 128
        %1850 = vxpose.xlu0.b32.end [16/16] 0.0, 128
        %v1851 = vpop.trf.xlu0
        %v1852 = vpop.trf.xlu0
        %v1853 = vpop.trf.xlu0
        %v1854 = vpop.trf.xlu0
        %v1855 = vpop.trf.xlu0
        %v1856 = vpop.trf.xlu0
        %v1857 = vpop.trf.xlu0
        %v1858 = vpop.trf.xlu0
        %v1859 = vpop.trf.xlu0
        %v1860 = vpop.trf.xlu0
        %v1861 = vpop.trf.xlu0
        %v1862 = vpop.trf.xlu0
        %v1863 = vpop.trf.xlu0
        %v1864 = vpop.trf.xlu0
        %v1865 = vpop.trf.xlu0
        %v1866 = vpop.trf.xlu0
        %v1871 = vcombine.high %v1851, %v1851
        %v1873 = vunpack.c.l.s4 1983009808
        %v1874 = vunpack.c.0.s8 %v1873
        %v1875 = vlaneseq
        %v1876 = vshrl.u32 %v1875, 7
        %v1877 = vsub.s32 %v1874, %v1876
        %v1878 = vrot.slane %v1851, %v1877
        %v1880 = vunpack.c.l.s4 1983009808
        %v1881 = vunpack.c.0.s8 %v1880
        %v1882 = vlaneseq
        %v1883 = vshrl.u32 %v1882, 7
        %v1884 = vsub.s32 %v1881, %v1883
        %v1885 = vrot.slane %v1871, %v1884
        %v1886 = vcombine.high %v1878, %v1878
        %v1887 = vcombine.high %v1885, %v1885
        %v1888 = vcombine.high %v1852, %v1852
        %v1890 = vunpack.c.l.s4 1983009808
        %v1891 = vunpack.c.0.s8 %v1890
        %v1892 = vlaneseq
        %v1893 = vshrl.u32 %v1892, 7
        %v1894 = vsub.s32 %v1891, %v1893
        %v1895 = vrot.slane %v1852, %v1894
        %v1897 = vunpack.c.l.s4 1983009808
        %v1898 = vunpack.c.0.s8 %v1897
        %v1899 = vlaneseq
        %v1900 = vshrl.u32 %v1899, 7
        %v1901 = vsub.s32 %v1898, %v1900
        %v1902 = vrot.slane %v1888, %v1901
        %v1903 = vcombine.high %v1895, %v1895
        %v1904 = vcombine.high %v1902, %v1902
        %v1905 = vcombine.high %v1853, %v1853
        %v1907 = vunpack.c.l.s4 1983009808
        %v1908 = vunpack.c.0.s8 %v1907
        %v1909 = vlaneseq
        %v1910 = vshrl.u32 %v1909, 7
        %v1911 = vsub.s32 %v1908, %v1910
        %v1912 = vrot.slane %v1853, %v1911
        %v1914 = vunpack.c.l.s4 1983009808
        %v1915 = vunpack.c.0.s8 %v1914
        %v1916 = vlaneseq
        %v1917 = vshrl.u32 %v1916, 7
        %v1918 = vsub.s32 %v1915, %v1917
        %v1919 = vrot.slane %v1905, %v1918
        %v1920 = vcombine.high %v1912, %v1912
        %v1921 = vcombine.high %v1919, %v1919
        %v1923 = vunpack.c.l.s4 1983009808
        %v1924 = vunpack.c.0.s8 %v1923
        %v1925 = vlaneseq
        %v1926 = vshrl.u32 %v1925, 7
        %v1927 = vsub.s32 %v1924, %v1926
        %v1928 = vrot.slane %v1854, %v1927
        %v1929 = vcombine.high %v1928, %v1928
        %vm1944 = vcmask 123904
        %v1945 = vsel %vm1944, %v1878, -inf
        %v1946 = vrot.slane %v1945, 4
        %v1947 = vmax.f32 %v1945, %v1946
        %v1948 = vrot.slane %v1947, 2
        %v1949 = vmax.f32 %v1947, %v1948
        %v1950 = vrot.slane %v1949, 1
        %v1951 = vmax.f32 %v1949, %v1950
        %v1952 = vsel %vm1944, %v1886, -inf
        %v1953 = vrot.slane %v1952, 4
        %v1954 = vmax.f32 %v1952, %v1953
        %v1955 = vrot.slane %v1954, 2
        %v1956 = vmax.f32 %v1954, %v1955
        %v1957 = vrot.slane %v1956, 1
        %v1958 = vmax.f32 %v1956, %v1957
        %v1959 = vsel %vm1944, %v1885, -inf
        %v1960 = vrot.slane %v1959, 4
        %v1961 = vmax.f32 %v1959, %v1960
        %v1962 = vrot.slane %v1961, 2
        %v1963 = vmax.f32 %v1961, %v1962
        %v1964 = vrot.slane %v1963, 1
        %v1965 = vmax.f32 %v1963, %v1964
        %v1966 = vsel %vm1944, %v1887, -inf
        %v1967 = vrot.slane %v1966, 4
        %v1968 = vmax.f32 %v1966, %v1967
        %v1969 = vrot.slane %v1968, 2
        %v1970 = vmax.f32 %v1968, %v1969
        %v1971 = vrot.slane %v1970, 1
        %v1972 = vmax.f32 %v1970, %v1971
        %v1973 = vsel %vm1944, %v1895, -inf
        %v1974 = vrot.slane %v1973, 4
        %v1975 = vmax.f32 %v1973, %v1974
        %v1976 = vrot.slane %v1975, 2
        %v1977 = vmax.f32 %v1975, %v1976
        %v1978 = vrot.slane %v1977, 1
        %v1979 = vmax.f32 %v1977, %v1978
        %v1980 = vsel %vm1944, %v1903, -inf
        %v1981 = vrot.slane %v1980, 4
        %v1982 = vmax.f32 %v1980, %v1981
        %v1983 = vrot.slane %v1982, 2
        %v1984 = vmax.f32 %v1982, %v1983
        %v1985 = vrot.slane %v1984, 1
        %v1986 = vmax.f32 %v1984, %v1985
        %v1987 = vsel %vm1944, %v1902, -inf
        %v1988 = vrot.slane %v1987, 4
        %v1989 = vmax.f32 %v1987, %v1988
        %v1990 = vrot.slane %v1989, 2
        %v1991 = vmax.f32 %v1989, %v1990
        %v1992 = vrot.slane %v1991, 1
        %v1993 = vmax.f32 %v1991, %v1992
        %v1994 = vsel %vm1944, %v1904, -inf
        %v1995 = vrot.slane %v1994, 4
        %v1996 = vmax.f32 %v1994, %v1995
        %v1997 = vrot.slane %v1996, 2
        %v1998 = vmax.f32 %v1996, %v1997
        %v1999 = vrot.slane %v1998, 1
        %v2000 = vmax.f32 %v1998, %v1999
        %v2001 = vsel %vm1944, %v1912, -inf
        %v2002 = vrot.slane %v2001, 4
        %v2003 = vmax.f32 %v2001, %v2002
        %v2004 = vrot.slane %v2003, 2
        %v2005 = vmax.f32 %v2003, %v2004
        %v2006 = vrot.slane %v2005, 1
        %v2007 = vmax.f32 %v2005, %v2006
        %v2008 = vsel %vm1944, %v1920, -inf
        %v2009 = vrot.slane %v2008, 4
        %v2010 = vmax.f32 %v2008, %v2009
        %v2011 = vrot.slane %v2010, 2
        %v2012 = vmax.f32 %v2010, %v2011
        %v2013 = vrot.slane %v2012, 1
        %v2014 = vmax.f32 %v2012, %v2013
        %v2015 = vsel %vm1944, %v1919, -inf
        %v2016 = vrot.slane %v2015, 4
        %v2017 = vmax.f32 %v2015, %v2016
        %v2018 = vrot.slane %v2017, 2
        %v2019 = vmax.f32 %v2017, %v2018
        %v2020 = vrot.slane %v2019, 1
        %v2021 = vmax.f32 %v2019, %v2020
        %v2022 = vsel %vm1944, %v1921, -inf
        %v2023 = vrot.slane %v2022, 4
        %v2024 = vmax.f32 %v2022, %v2023
        %v2025 = vrot.slane %v2024, 2
        %v2026 = vmax.f32 %v2024, %v2025
        %v2027 = vrot.slane %v2026, 1
        %v2028 = vmax.f32 %v2026, %v2027
        %v2029 = vsel %vm1944, %v1928, -inf
        %v2030 = vrot.slane %v2029, 4
        %v2031 = vmax.f32 %v2029, %v2030
        %v2032 = vrot.slane %v2031, 2
        %v2033 = vmax.f32 %v2031, %v2032
        %v2034 = vrot.slane %v2033, 1
        %v2035 = vmax.f32 %v2033, %v2034
        %v2036 = vsel %vm1944, %v1929, -inf
        %v2037 = vrot.slane %v2036, 4
        %v2038 = vmax.f32 %v2036, %v2037
        %v2039 = vrot.slane %v2038, 2
        %v2040 = vmax.f32 %v2038, %v2039
        %v2041 = vrot.slane %v2040, 1
        %v2042 = vmax.f32 %v2040, %v2041
        %v2057 = vsel %vm1504, %v1958, %v1951
        %v2058 = vsel %vm1506, %v1965, %v2057
        %v2059 = vsel %vm1508, %v1972, %v2058
        %v2060 = vsel %vm1510, %v1979, %v2059
        %v2061 = vsel %vm1512, %v1986, %v2060
        %v2062 = vsel %vm1514, %v1993, %v2061
        %v2063 = vsel %vm1516, %v2000, %v2062
        %v2064 = vsel %vm1504, %v2014, %v2007
        %v2065 = vsel %vm1506, %v2021, %v2064
        %v2066 = vsel %vm1508, %v2028, %v2065
        %v2067 = vsel %vm1510, %v2035, %v2066
        %v2068 = vsel %vm1512, %v2042, %v2067
        %2071 = vxpose.xlu0.b32.start [1/16] %v2063, 128
        %2072 = vxpose.xlu0.b32.cont [2/16] %v2068, 128
        %2073 = vxpose.xlu0.b32.cont [3/16] 0.0, 128
        %2074 = vxpose.xlu0.b32.cont [4/16] 0.0, 128
        %2075 = vxpose.xlu0.b32.cont [5/16] 0.0, 128
        %2076 = vxpose.xlu0.b32.cont [6/16] 0.0, 128
        %2077 = vxpose.xlu0.b32.cont [7/16] 0.0, 128
        %2078 = vxpose.xlu0.b32.cont [8/16] 0.0, 128
        %2079 = vxpose.xlu0.b32.cont [9/16] 0.0, 128
        %2080 = vxpose.xlu0.b32.cont [10/16] 0.0, 128
        %2081 = vxpose.xlu0.b32.cont [11/16] 0.0, 128
        %2082 = vxpose.xlu0.b32.cont [12/16] 0.0, 128
        %2083 = vxpose.xlu0.b32.cont [13/16] 0.0, 128
        %2084 = vxpose.xlu0.b32.cont [14/16] 0.0, 128
        %2085 = vxpose.xlu0.b32.cont [15/16] 0.0, 128
        %2086 = vxpose.xlu0.b32.end [16/16] 0.0, 128
        %v2087 = vpop.trf.xlu0
        %v2088 = vpop.trf.xlu0
        %v2089 = vpop.trf.xlu0
        %v2090 = vpop.trf.xlu0
        %v2091 = vpop.trf.xlu0
        %v2092 = vpop.trf.xlu0
        %v2093 = vpop.trf.xlu0
        %v2094 = vpop.trf.xlu0
        %v2095 = vpop.trf.xlu0
        %v2096 = vpop.trf.xlu0
        %v2097 = vpop.trf.xlu0
        %v2098 = vpop.trf.xlu0
        %v2099 = vpop.trf.xlu0
        %v2100 = vpop.trf.xlu0
        %v2101 = vpop.trf.xlu0
        %v2102 = vpop.trf.xlu0
        %2105 = vrot.lane.b32.xlu0 %v2087, 127
        %v2106 = vpop.permute.xlu0 %2105
        %2107 = vrot.lane.b32.xlu0 %v2088, 127
        %v2108 = vpop.permute.xlu0 %2107
        %2112 = vset.pattern.permute.xlu0 0
        %2113 = vperm.xlu0 %2112, %v553
        %v2114 = vpop.permute.xlu0 %2113
        %2117 = vset.pattern.permute.xlu0 0
        %2118 = vperm.xlu0 %2117, %v554
        %v2119 = vpop.permute.xlu0 %2118
        %v2122 = vsel %vm1715, %v551, 0
        %v2125 = vsel %vm1715, %v552, 0
        %2127 = vmatprep.subr.mxu0 0.0
        %2128 = vmatpush1.msra.mxu0 %v2087
        %2129 = vmatprep.subr.mxu0 0.0
        %2130 = vmatpush1.msra.mxu0 %v2088
        %2131 = vmatprep.subr.mxu0 0.0
        %2132 = vmatpush1.msra.mxu0 %v2106
        %2133 = vmatprep.subr.mxu0 0.0
        %2134 = vmatpush1.msra.mxu0 %v2108
        %2135 = vmatprep.subr.mxu0 0.0
        %2136 = vmatpush1.msra.mxu0 0.0
        %2137 = vmatprep.subr.mxu0 0.0
        %2138 = vmatpush1.msra.mxu0 0.0
        %2139 = vmatprep.subr.mxu0 0.0
        %2140 = vmatpush1.msra.mxu0 0.0
        %2141 = vmatprep.subr.mxu0 0.0
        %2142 = vmatpush1.msra.mxu0 0.0
        %2143 = vmatprep.subr.mxu0 0.0
        %2144 = vmatpush1.msra.mxu0 0.0
        %2145 = vmatprep.subr.mxu0 0.0
        %2146 = vmatpush1.msra.mxu0 0.0
        %2147 = vmatprep.subr.mxu0 0.0
        %2148 = vmatpush1.msra.mxu0 0.0
        %2149 = vmatprep.subr.mxu0 0.0
        %2150 = vmatpush1.msra.mxu0 0.0
        %2151 = vmatprep.subr.mxu0 0.0
        %2152 = vmatpush1.msra.mxu0 0.0
        %2153 = vmatprep.subr.mxu0 0.0
        %2154 = vmatpush1.msra.mxu0 0.0
        %2155 = vmatprep.subr.mxu0 0.0
        %2156 = vmatpush1.msra.mxu0 0.0
        %2157 = vmatprep.subr.mxu0 0.0
        %2158 = vmatpush1.msra.mxu0 0.0
        %2159 = vmatprep.subr.mxu0 0.0
        %2160 = vmatpush1.msra.mxu0 0.0
        %2161 = vmatprep.subr.mxu0 0.0
        %2162 = vmatpush1.msra.mxu0 0.0
        %2163 = vmatprep.subr.mxu0 0.0
        %2164 = vmatpush1.msra.mxu0 0.0
        %2165 = vmatprep.subr.mxu0 0.0
        %2166 = vmatpush1.msra.mxu0 0.0
        %2167 = vmatprep.subr.mxu0 0.0
        %2168 = vmatpush1.msra.mxu0 0.0
        %2169 = vmatprep.subr.mxu0 0.0
        %2170 = vmatpush1.msra.mxu0 0.0
        %2171 = vmatprep.subr.mxu0 0.0
        %2172 = vmatpush1.msra.mxu0 0.0
        %2173 = vmatprep.subr.mxu0 0.0
        %2174 = vmatpush1.msra.mxu0 0.0
        %2175 = vmatprep.subr.mxu0 0.0
        %2176 = vmatpush1.msra.mxu0 0.0
        %2177 = vmatprep.subr.mxu0 0.0
        %2178 = vmatpush1.msra.mxu0 0.0
        %2179 = vmatprep.subr.mxu0 0.0
        %2180 = vmatpush1.msra.mxu0 0.0
        %2181 = vmatprep.subr.mxu0 0.0
        %2182 = vmatpush1.msra.mxu0 0.0
        %2183 = vmatprep.subr.mxu0 0.0
        %2184 = vmatpush1.msra.mxu0 0.0
        %2185 = vmatprep.subr.mxu0 0.0
        %2186 = vmatpush1.msra.mxu0 0.0
        %2187 = vmatprep.subr.mxu0 0.0
        %2188 = vmatpush1.msra.mxu0 0.0
        %2189 = vmatprep.subr.mxu0 0.0
        %2190 = vmatpush1.msra.mxu0 0.0
        %2191 = vmatprep.mubr.f32.mxu0 0.0
        %2192 = vmatmul.mubr.f32.gmra.mrb[0].mxu0 %v2122
        %v2193 = vpop.f32.mrb[0].mxu0
        %v2194 = vadd.f32 %v2114, %v2193
        %v2195 = vpop.f32.mrb[0].mxu0
        %2196 = vmatprep.mubr.f32.mxu0 0.0
        %2197 = vmatmul.mubr.f32.gmra.mrb[0].mxu0 %v2125
        %v2198 = vpop.f32.mrb[0].mxu0
        %v2199 = vadd.f32 %v2119, %v2198
        %v2200 = vpop.f32.mrb[0].mxu0
        %2201 = vdwg.mxu0
        %vm2202 = vcmp.gt.f32.partialorder %v2194, 0.0
        %vm2203 = vcmp.gt.f32.partialorder %v2199, 0.0
        %v2204 = vmin.f32 %v2194, 0.0
        %v2205 = vmin.f32 %v2199, 0.0
        %v2206 = vmul.f32 %v2204, 1.442695
        %v2207 = vpow.pop %v2206
        %v2208 = vmul.f32 %v2205, 1.442695
        %v2209 = vpow.pop %v2208
        %v2210 = vsub.f32 %v2207, 1.0
        %v2211 = vsub.f32 %v2209, 1.0
        %v2212 = vmul.f32 %v2210, 1.6732632
        %v2213 = vmul.f32 %v2211, 1.6732632
        %v2214 = vsel %vm2202, %v2194, %v2212
        %v2215 = vsel %vm2203, %v2199, %v2213
        %v2216 = vmul.f32 %v2214, 1.050701
        %v2217 = vmul.f32 %v2215, 1.050701
        %2220 = vrot.lane.b32.xlu0 %v2216, 127
        %v2221 = vpop.permute.xlu0 %2220
        %2222 = vrot.lane.b32.xlu0 %v2217, 127
        %v2223 = vpop.permute.xlu0 %2222
        %2227 = vset.pattern.permute.xlu0 0
        %2228 = vperm.xlu0 %2227, %v557
        %v2229 = vpop.permute.xlu0 %2228
        %2232 = vset.pattern.permute.xlu0 0
        %2233 = vperm.xlu0 %2232, %v558
        %v2234 = vpop.permute.xlu0 %2233
        %v2237 = vsel %vm1715, %v555, 0
        %v2240 = vsel %vm1715, %v556, 0
        %2242 = vmatprep.subr.mxu0 0.0
        %2243 = vmatpush1.msra.mxu0 %v2216
        %2244 = vmatprep.subr.mxu0 0.0
        %2245 = vmatpush1.msra.mxu0 %v2217
        %2246 = vmatprep.subr.mxu0 0.0
        %2247 = vmatpush1.msra.mxu0 %v2221
        %2248 = vmatprep.subr.mxu0 0.0
        %2249 = vmatpush1.msra.mxu0 %v2223
        %2250 = vmatprep.subr.mxu0 0.0
        %2251 = vmatpush1.msra.mxu0 0.0
        %2252 = vmatprep.subr.mxu0 0.0
        %2253 = vmatpush1.msra.mxu0 0.0
        %2254 = vmatprep.subr.mxu0 0.0
        %2255 = vmatpush1.msra.mxu0 0.0
        %2256 = vmatprep.subr.mxu0 0.0
        %2257 = vmatpush1.msra.mxu0 0.0
        %2258 = vmatprep.subr.mxu0 0.0
        %2259 = vmatpush1.msra.mxu0 0.0
        %2260 = vmatprep.subr.mxu0 0.0
        %2261 = vmatpush1.msra.mxu0 0.0
        %2262 = vmatprep.subr.mxu0 0.0
        %2263 = vmatpush1.msra.mxu0 0.0
        %2264 = vmatprep.subr.mxu0 0.0
        %2265 = vmatpush1.msra.mxu0 0.0
        %2266 = vmatprep.subr.mxu0 0.0
        %2267 = vmatpush1.msra.mxu0 0.0
        %2268 = vmatprep.subr.mxu0 0.0
        %2269 = vmatpush1.msra.mxu0 0.0
        %2270 = vmatprep.subr.mxu0 0.0
        %2271 = vmatpush1.msra.mxu0 0.0
        %2272 = vmatprep.subr.mxu0 0.0
        %2273 = vmatpush1.msra.mxu0 0.0
        %2274 = vmatprep.subr.mxu0 0.0
        %2275 = vmatpush1.msra.mxu0 0.0
        %2276 = vmatprep.subr.mxu0 0.0
        %2277 = vmatpush1.msra.mxu0 0.0
        %2278 = vmatprep.subr.mxu0 0.0
        %2279 = vmatpush1.msra.mxu0 0.0
        %2280 = vmatprep.subr.mxu0 0.0
        %2281 = vmatpush1.msra.mxu0 0.0
        %2282 = vmatprep.subr.mxu0 0.0
        %2283 = vmatpush1.msra.mxu0 0.0
        %2284 = vmatprep.subr.mxu0 0.0
        %2285 = vmatpush1.msra.mxu0 0.0
        %2286 = vmatprep.subr.mxu0 0.0
        %2287 = vmatpush1.msra.mxu0 0.0
        %2288 = vmatprep.subr.mxu0 0.0
        %2289 = vmatpush1.msra.mxu0 0.0
        %2290 = vmatprep.subr.mxu0 0.0
        %2291 = vmatpush1.msra.mxu0 0.0
        %2292 = vmatprep.subr.mxu0 0.0
        %2293 = vmatpush1.msra.mxu0 0.0
        %2294 = vmatprep.subr.mxu0 0.0
        %2295 = vmatpush1.msra.mxu0 0.0
        %2296 = vmatprep.subr.mxu0 0.0
        %2297 = vmatpush1.msra.mxu0 0.0
        %2298 = vmatprep.subr.mxu0 0.0
        %2299 = vmatpush1.msra.mxu0 0.0
        %2300 = vmatprep.subr.mxu0 0.0
        %2301 = vmatpush1.msra.mxu0 0.0
        %2302 = vmatprep.subr.mxu0 0.0
        %2303 = vmatpush1.msra.mxu0 0.0
        %2304 = vmatprep.subr.mxu0 0.0
        %2305 = vmatpush1.msra.mxu0 0.0
        %2306 = vmatprep.mubr.f32.mxu0 0.0
        %2307 = vmatmul.mubr.f32.gmra.mrb[0].mxu0 %v2237
        %v2308 = vpop.f32.mrb[0].mxu0
        %v2309 = vadd.f32 %v2229, %v2308
        %v2310 = vpop.f32.mrb[0].mxu0
        %2311 = vmatprep.mubr.f32.mxu0 0.0
        %2312 = vmatmul.mubr.f32.gmra.mrb[0].mxu0 %v2240
        %v2313 = vpop.f32.mrb[0].mxu0
        %v2314 = vadd.f32 %v2234, %v2313
        %v2315 = vpop.f32.mrb[0].mxu0
        %2316 = vdwg.mxu0
        %vm2317 = vcmp.gt.f32.partialorder %v2309, 0.0
        %vm2318 = vcmp.gt.f32.partialorder %v2314, 0.0
        %v2319 = vmin.f32 %v2309, 0.0
        %v2320 = vmin.f32 %v2314, 0.0
        %v2321 = vmul.f32 %v2319, 1.442695
        %v2322 = vpow.pop %v2321
        %v2323 = vmul.f32 %v2320, 1.442695
        %v2324 = vpow.pop %v2323
        %v2325 = vsub.f32 %v2322, 1.0
        %v2326 = vsub.f32 %v2324, 1.0
        %v2327 = vmul.f32 %v2325, 1.6732632
        %v2328 = vmul.f32 %v2326, 1.6732632
        %v2329 = vsel %vm2317, %v2309, %v2327
        %v2330 = vsel %vm2318, %v2314, %v2328
        %v2331 = vmul.f32 %v2329, 1.050701
        %v2332 = vmul.f32 %v2330, 1.050701
        %2334 = vset.pattern.permute.xlu0 0
        %2335 = vperm.xlu0 %2334, %v565
        %v2336 = vpop.permute.xlu0 %2335
        %2339 = vset.pattern.permute.xlu0 0
        %2340 = vperm.xlu0 %2339, %v566
        %v2341 = vpop.permute.xlu0 %2340
        %v2343 = vmul.f32 %v2331, %v2336
        %v2344 = vmul.f32 %v2332, %v2341
        %2345 = vset.pattern.permute.xlu0 1
        %2346 = vperm.xlu0 %2345, %v565
        %v2347 = vpop.permute.xlu0 %2346
        %2349 = vset.pattern.permute.xlu0 1
        %2350 = vperm.xlu0 %2349, %v566
        %v2351 = vpop.permute.xlu0 %2350
        %v2353 = vadd.f32 %v2343, %v2347
        %v2354 = vadd.f32 %v2344, %v2351
        %2355 = vxpose.xlu0.b32.start [1/16] %v2353, 128
        %2356 = vxpose.xlu0.b32.cont [2/16] %v2354, 128
        %2357 = vxpose.xlu0.b32.cont [3/16] 0.0, 128
        %2358 = vxpose.xlu0.b32.cont [4/16] 0.0, 128
        %2359 = vxpose.xlu0.b32.cont [5/16] 0.0, 128
        %2360 = vxpose.xlu0.b32.cont [6/16] 0.0, 128
        %2361 = vxpose.xlu0.b32.cont [7/16] 0.0, 128
        %2362 = vxpose.xlu0.b32.cont [8/16] 0.0, 128
        %2363 = vxpose.xlu0.b32.cont [9/16] 0.0, 128
        %2364 = vxpose.xlu0.b32.cont [10/16] 0.0, 128
        %2365 = vxpose.xlu0.b32.cont [11/16] 0.0, 128
        %2366 = vxpose.xlu0.b32.cont [12/16] 0.0, 128
        %2367 = vxpose.xlu0.b32.cont [13/16] 0.0, 128
        %2368 = vxpose.xlu0.b32.cont [14/16] 0.0, 128
        %2369 = vxpose.xlu0.b32.cont [15/16] 0.0, 128
        %2370 = vxpose.xlu0.b32.end [16/16] 0.0, 128
        %v2371 = vpop.trf.xlu0
        %v2372 = vpop.trf.xlu0
        %v2373 = vpop.trf.xlu0
        %v2374 = vpop.trf.xlu0
        %v2375 = vpop.trf.xlu0
        %v2376 = vpop.trf.xlu0
        %v2377 = vpop.trf.xlu0
        %v2378 = vpop.trf.xlu0
        %v2379 = vpop.trf.xlu0
        %v2380 = vpop.trf.xlu0
        %v2381 = vpop.trf.xlu0
        %v2382 = vpop.trf.xlu0
        %v2383 = vpop.trf.xlu0
        %v2384 = vpop.trf.xlu0
        %v2385 = vpop.trf.xlu0
        %v2386 = vpop.trf.xlu0
        %v2389 = vcombine.high %v2371, %v2371
        %v2391 = vunpack.c.l.s4 1983009808
        %v2392 = vunpack.c.0.s8 %v2391
        %v2393 = vlaneseq
        %v2394 = vshrl.u32 %v2393, 7
        %v2395 = vsub.s32 %v2392, %v2394
        %v2396 = vrot.slane %v2371, %v2395
        %v2398 = vunpack.c.l.s4 1983009808
        %v2399 = vunpack.c.0.s8 %v2398
        %v2400 = vlaneseq
        %v2401 = vshrl.u32 %v2400, 7
        %v2402 = vsub.s32 %v2399, %v2401
        %v2403 = vrot.slane %v2389, %v2402
        %v2404 = vcombine.high %v2396, %v2396
        %v2405 = vcombine.high %v2403, %v2403
        %v2407 = vunpack.c.l.s4 1983009808
        %v2408 = vunpack.c.0.s8 %v2407
        %v2409 = vlaneseq
        %v2410 = vshrl.u32 %v2409, 7
        %v2411 = vsub.s32 %v2408, %v2410
        %v2412 = vrot.slane %v2372, %v2411
        %v2413 = vcombine.high %v2412, %v2412
        %v2420 = vsel %vm1944, %v2396, -inf
        %v2421 = vrot.slane %v2420, 4
        %v2422 = vmax.f32 %v2420, %v2421
        %v2423 = vrot.slane %v2422, 2
        %v2424 = vmax.f32 %v2422, %v2423
        %v2425 = vrot.slane %v2424, 1
        %v2426 = vmax.f32 %v2424, %v2425
        %v2427 = vsel %vm1944, %v2404, -inf
        %v2428 = vrot.slane %v2427, 4
        %v2429 = vmax.f32 %v2427, %v2428
        %v2430 = vrot.slane %v2429, 2
        %v2431 = vmax.f32 %v2429, %v2430
        %v2432 = vrot.slane %v2431, 1
        %v2433 = vmax.f32 %v2431, %v2432
        %v2434 = vsel %vm1944, %v2403, -inf
        %v2435 = vrot.slane %v2434, 4
        %v2436 = vmax.f32 %v2434, %v2435
        %v2437 = vrot.slane %v2436, 2
        %v2438 = vmax.f32 %v2436, %v2437
        %v2439 = vrot.slane %v2438, 1
        %v2440 = vmax.f32 %v2438, %v2439
        %v2441 = vsel %vm1944, %v2405, -inf
        %v2442 = vrot.slane %v2441, 4
        %v2443 = vmax.f32 %v2441, %v2442
        %v2444 = vrot.slane %v2443, 2
        %v2445 = vmax.f32 %v2443, %v2444
        %v2446 = vrot.slane %v2445, 1
        %v2447 = vmax.f32 %v2445, %v2446
        %v2448 = vsel %vm1944, %v2412, -inf
        %v2449 = vrot.slane %v2448, 4
        %v2450 = vmax.f32 %v2448, %v2449
        %v2451 = vrot.slane %v2450, 2
        %v2452 = vmax.f32 %v2450, %v2451
        %v2453 = vrot.slane %v2452, 1
        %v2454 = vmax.f32 %v2452, %v2453
        %v2455 = vsel %vm1944, %v2413, -inf
        %v2456 = vrot.slane %v2455, 4
        %v2457 = vmax.f32 %v2455, %v2456
        %v2458 = vrot.slane %v2457, 2
        %v2459 = vmax.f32 %v2457, %v2458
        %v2460 = vrot.slane %v2459, 1
        %v2461 = vmax.f32 %v2459, %v2460
        %v2468 = vsel %vm1504, %v2433, %v2426
        %v2469 = vsel %vm1506, %v2440, %v2468
        %v2470 = vsel %vm1508, %v2447, %v2469
        %v2471 = vsel %vm1510, %v2454, %v2470
        %v2472 = vsel %vm1512, %v2461, %v2471
        %2474 = vxpose.xlu0.b32.start [1/16] %v2472, 128
        %2475 = vxpose.xlu0.b32.cont [2/16] 0.0, 128
        %2476 = vxpose.xlu0.b32.cont [3/16] 0.0, 128
        %2477 = vxpose.xlu0.b32.cont [4/16] 0.0, 128
        %2478 = vxpose.xlu0.b32.cont [5/16] 0.0, 128
        %2479 = vxpose.xlu0.b32.cont [6/16] 0.0, 128
        %2480 = vxpose.xlu0.b32.cont [7/16] 0.0, 128
        %2481 = vxpose.xlu0.b32.cont [8/16] 0.0, 128
        %2482 = vxpose.xlu0.b32.cont [9/16] 0.0, 128
        %2483 = vxpose.xlu0.b32.cont [10/16] 0.0, 128
        %2484 = vxpose.xlu0.b32.cont [11/16] 0.0, 128
        %2485 = vxpose.xlu0.b32.cont [12/16] 0.0, 128
        %2486 = vxpose.xlu0.b32.cont [13/16] 0.0, 128
        %2487 = vxpose.xlu0.b32.cont [14/16] 0.0, 128
        %2488 = vxpose.xlu0.b32.cont [15/16] 0.0, 128
        %2489 = vxpose.xlu0.b32.end [16/16] 0.0, 128
        %v2490 = vpop.trf.xlu0
        %v2491 = vpop.trf.xlu0
        %v2492 = vpop.trf.xlu0
        %v2493 = vpop.trf.xlu0
        %v2494 = vpop.trf.xlu0
        %v2495 = vpop.trf.xlu0
        %v2496 = vpop.trf.xlu0
        %v2497 = vpop.trf.xlu0
        %v2498 = vpop.trf.xlu0
        %v2499 = vpop.trf.xlu0
        %v2500 = vpop.trf.xlu0
        %v2501 = vpop.trf.xlu0
        %v2502 = vpop.trf.xlu0
        %v2503 = vpop.trf.xlu0
        %v2504 = vpop.trf.xlu0
        %v2505 = vpop.trf.xlu0
        %s2506 = smul.u32 %s568, 16
        %s2507 = scalar_lea.vmem %s525, %s2506
        %vm2508 = vcmask 48128
        %2509 = vst.msk [vmem:[%s2507] sm:$0xff] %vm2508, %v2490
        %2510 = vst.msk [vmem:[%s2507 + $0x8] sm:$0xff] %vm2508, %v2491
      $region89: #{tpu_custom_call.1} parent=83 // loop_footer
        %s572 = sadd.s32 1, %s568
      $region90: #{tpu_custom_call.1} parent=83 // loop_footer_branch
        %567 = sbr.rel target = $region86
      $region91: #{tpu_custom_call.1} parent=83 // loop_exit
        _
      %s2511 = smul.u32 2, %s27
      %p2512 = scmp.lt.s32.totalorder %s2511, 3
      %s2513 = scalar_select %p2512, %s2511, 3
      %s2514 = smul.addr %s2513, 2
      %s2515 = smul.addr %s2514, 8
      %s2516 = scalar_lea.vmem %s16, %s2515
      // Predicated region
      $region92: #{tpu_custom_call.1} parent=83 // pred_check
        %p2517 = pneg %p386
      $region93: #{tpu_custom_call.1} parent=83 // pred_check_branch
        %2519 = sbr.rel (%p2517) target = $region95
      $region94: #{tpu_custom_call.1} parent=83 // pred_region
        %s2520 = smul.u32 2, %s27
      $region95: #{tpu_custom_call.1} parent=83 // pred_fallthru
        _
    $region84: #{tpu_custom_call.1} parent=5 // pred_fallthru
      _
    %p2521 = scmp.le.s32.totalorder 2, %s22
    // Predicated region
    $region96: #{tpu_custom_call.1} parent=5 // pred_check
      %p2522 = pneg %p2521
    $region97: #{tpu_custom_call.1} parent=5 // pred_check_branch
      %2524 = sbr.rel (%p2522) target = $region99
    $region98: #{tpu_custom_call.1} parent=5 // pred_region
      %s2525 = ssub.s32 %s22, 2
      // Predicated region
      $region100: #{tpu_custom_call.1} parent=98 // pred_check
        %p2526 = pneg %p392
      $region101: #{tpu_custom_call.1} parent=98 // pred_check_branch
        %2528 = sbr.rel (%p2526) target = $region103
      $region102: #{tpu_custom_call.1} parent=98 // pred_region
        %s2529 = smul.u32 2, %s28
        %p2530 = scmp.lt.s32.totalorder %s2529, 3
        %s2531 = scalar_select %p2530, %s2529, 3
        %s2532 = smul.addr %s2531, 2
        %s2533 = smul.addr %s2532, 8
        %s2534 = scalar_lea.vmem %s16, %s2533
      $region103: #{tpu_custom_call.1} parent=98 // pred_fallthru
        _
    $region99: #{tpu_custom_call.1} parent=5 // pred_fallthru
      _
  $region6: #{tpu_custom_call.1} parent=0 // loop_footer
    %s26 = sadd.s32 1, %s22
  $region7: #{tpu_custom_call.1} parent=0 // loop_footer_branch
    %21 = sbr.rel target = $region3
  $region8: #{tpu_custom_call.1} parent=0 // loop_exit
    _

</llo_original>
